<compile_context>
chip_gen: v5e
topology: v5e:2x2
jax: 0.10.0
libtpu: 0.0.40
codegen_flags: <defaults>
</compile_context>

<pallas_src>
import jax
import jax.numpy as jnp
from jax.experimental import pallas as pl
from jax.experimental.pallas import tpu as pltpu

EPS = 1e-5                       # nn.BatchNorm2d default eps
_VMEM_LIMIT = 48 * 1024 * 1024   # raised scoped-VMEM; safely below v7x's 64 MiB


def _round_up(x, k):
    return ((x + k - 1) // k) * k


def _choose_tile_m(m):
    """Largest preferred M-tile that still gives >= 2 grid steps (pipelining).

    1024-row tiles sit near the measured HBM-roofline plateau and stay small
    enough (with CP multiples of 128 in bf16, double-buffered) for v7x's
    64 MiB VMEM and v5e's lower scoped default.
    """
    for tm in (1024, 512, 256, 128, 64, 32, 16, 8):
        if m >= 2 * tm:
            return tm
    return 8


# ----------------------------------------------------------------------------
# Kernel 1: conv3x3 (taps folded into K) + BN batch-statistics accumulation.
# ----------------------------------------------------------------------------
def _conv_stats_kernel(taps_ref, w_ref, y_ref, sum_ref, sq_ref):
    i = pl.program_id(0)

    @pl.when(i == 0)
    def _init():
        sum_ref[...] = jnp.zeros_like(sum_ref)
        sq_ref[...] = jnp.zeros_like(sq_ref)

    # One lane-dense bf16 matmul on the MXU, f32 accumulate.
    acc = jnp.dot(taps_ref[...], w_ref[...], preferred_element_type=jnp.float32)
    y_ref[...] = acc

    # Per-channel sum / sum-of-squares, carried across the "arbitrary" M axis.
    sum_ref[...] = sum_ref[...] + jnp.sum(acc, axis=0, keepdims=True)
    sq_ref[...] = sq_ref[...] + jnp.sum(acc * acc, axis=0, keepdims=True)


def _conv_stats(taps, w, *, tm):
    """taps: (MP, KP) bf16; w: (KP, CP) bf16 -> (y (MP,CP) f32, sum, sumsq (1,CP) f32)."""
    mp, kp = taps.shape
    cp = w.shape[1]
    cost = pl.CostEstimate(
        flops=2 * mp * kp * cp,
        transcendentals=0,
        bytes_accessed=mp * kp * 2 + kp * cp * 2 + mp * cp * 4 + 2 * cp * 4)
    return pl.pallas_call(
        _conv_stats_kernel,
        out_shape=(jax.ShapeDtypeStruct((mp, cp), jnp.float32),
                   jax.ShapeDtypeStruct((1, cp), jnp.float32),
                   jax.ShapeDtypeStruct((1, cp), jnp.float32)),
        grid_spec=pltpu.PrefetchScalarGridSpec(
            num_scalar_prefetch=0,
            grid=(mp // tm,),
            in_specs=[pl.BlockSpec((tm, kp), lambda i: (i, 0)),    # streamed M-tiles
                      pl.BlockSpec((kp, cp), lambda i: (0, 0))],   # resident weights
            out_specs=(pl.BlockSpec((tm, cp), lambda i: (i, 0)),   # streamed conv out
                       pl.BlockSpec((1, cp), lambda i: (0, 0)),    # resident accumulators
                       pl.BlockSpec((1, cp), lambda i: (0, 0)))),
        compiler_params=pltpu.CompilerParams(
            # BN stats are carried across M-tiles -> this axis must be sequential.
            dimension_semantics=("arbitrary",),
            vmem_limit_bytes=_VMEM_LIMIT),
        cost_estimate=cost,
    )(taps, w)


# ----------------------------------------------------------------------------
# Kernel 2: BN normalize (precomputed scale/shift) + optional ReLU / residual.
# ----------------------------------------------------------------------------
def _make_norm_kernel(apply_relu, add_residual):
    def kernel(*refs):
        if add_residual:
            y_ref, sc_ref, sh_ref, res_ref, o_ref = refs
        else:
            y_ref, sc_ref, sh_ref, o_ref = refs
        v = y_ref[...] * sc_ref[...] + sh_ref[...]      # f32 elementwise (v5e-safe)
        if apply_relu:
            v = jnp.maximum(v, 0.0)
        if add_residual:
            v = v + res_ref[...]
        o_ref[...] = v.astype(o_ref.dtype)
    return kernel


def _norm_stage(y, scale, shift, residual, *, apply_relu, tm, out_dtype):
    mp, cp = y.shape
    args = [y, scale, shift]
    in_specs = [pl.BlockSpec((tm, cp), lambda i: (i, 0)),
                pl.BlockSpec((1, cp), lambda i: (0, 0)),
                pl.BlockSpec((1, cp), lambda i: (0, 0))]
    if residual is not None:
        args.append(residual)
        in_specs.append(pl.BlockSpec((tm, cp), lambda i: (i, 0)))
    return pl.pallas_call(
        _make_norm_kernel(apply_relu, residual is not None),
        out_shape=jax.ShapeDtypeStruct((mp, cp), out_dtype),
        grid_spec=pltpu.PrefetchScalarGridSpec(
            num_scalar_prefetch=0,
            grid=(mp // tm,),
            in_specs=in_specs,
            out_specs=pl.BlockSpec((tm, cp), lambda i: (i, 0))),
        compiler_params=pltpu.CompilerParams(
            dimension_semantics=("parallel",),   # independent M-tiles (megacore-friendly)
            vmem_limit_bytes=_VMEM_LIMIT),
    )(*args)


# ----------------------------------------------------------------------------
# JAX glue: folded im2col, channel/row padding, BN affine finalization.
# ----------------------------------------------------------------------------
def _im2col_folded(x_nhwc):
    """(N,H,W,C) -> (N*H*W, 9*C); column index = (dh*3+dw)*C + c."""
    n, h, w, c = x_nhwc.shape
    xp = jnp.pad(x_nhwc, ((0, 0), (1, 1), (1, 1), (0, 0)))
    taps = [xp[:, dh:dh + h, dw:dw + w, :] for dh in range(3) for dw in range(3)]
    return jnp.concatenate(taps, axis=-1).reshape(n * h * w, 9 * c)


def _pad2(a, rows, cols):
    r, c = a.shape
    return jnp.pad(a, ((0, rows - r), (0, cols - c)))


def _bn_scale_shift(ssum, ssq, m, gamma, beta):
    """Fold training-mode BN into a per-channel affine: y*scale + shift."""
    mean = ssum / m
    var = jnp.maximum(ssq / m - mean * mean, 0.0)
    scale = gamma * jax.lax.rsqrt(var + EPS)
    shift = beta - mean * scale
    return scale, shift


@jax.jit
def residual_block(x_nchw, params):
    """Forward pass of ResidualBlock.  x_nchw: (N, C, H, W) float32."""
    n, c, h, w = x_nchw.shape
    m = n * h * w
    cp = _round_up(c, 128)          # lane-dense output channels
    kp = _round_up(9 * c, 128)      # folded 3x3 taps, lane-dense K
    tm = _choose_tile_m(m)
    mp = _round_up(m, tm)           # zero-padded rows contribute 0 to the stats

    x = jnp.transpose(x_nchw, (0, 2, 3, 1)).astype(jnp.float32)   # NHWC

    w1 = _pad2(params["w1"], kp, cp).astype(jnp.bfloat16)
    w2 = _pad2(params["w2"], kp, cp).astype(jnp.bfloat16)
    g1 = _pad2(params["g1"].reshape(1, c), 1, cp)
    be1 = _pad2(params["be1"].reshape(1, c), 1, cp)
    g2 = _pad2(params["g2"].reshape(1, c), 1, cp)
    be2 = _pad2(params["be2"].reshape(1, c), 1, cp)

    # --- stage 1: conv1 + BN1 stats, then normalize + ReLU -------------------
    taps1 = _pad2(_im2col_folded(x), mp, kp).astype(jnp.bfloat16)
    y1, s1, q1 = _conv_stats(taps1, w1, tm=tm)
    sc1, sh1 = _bn_scale_shift(s1, q1, float(m), g1, be1)
    a1 = _norm_stage(y1, sc1, sh1, None, apply_relu=True, tm=tm,
                     out_dtype=jnp.bfloat16)

    # --- stage 2: conv2 + BN2 stats, then normalize + residual add -----------
    a1_img = a1[:m, :c].reshape(n, h, w, c)                # bf16 activation
    taps2 = _pad2(_im2col_folded(a1_img), mp, kp)          # already bf16
    y2, s2, q2 = _conv_stats(taps2, w2, tm=tm)
    sc2, sh2 = _bn_scale_shift(s2, q2, float(m), g2, be2)
    res = _pad2(x.reshape(m, c), mp, cp)                   # f32 residual
    out = _norm_stage(y2, sc2, sh2, res, apply_relu=False, tm=tm,
                      out_dtype=jnp.float32)

    out = out[:m, :c].reshape(n, h, w, c)
    return jnp.transpose(out, (0, 3, 1, 2))                # back to NCHW


# ----------------------------------------------------------------------------
# Deterministic parameter init (PyTorch shapes: conv weight (Cout, Cin, 3, 3)).
# ----------------------------------------------------------------------------
def init_params(key, channels):
    c = channels
    k1, k2, k3, k4 = jax.random.split(key, 4)
    bound = 1.0 / jnp.sqrt(c * 9.0)
    w1_pt = jax.random.uniform(k1, (c, c, 3, 3), jnp.float32, -bound, bound)
    b1_pt = jax.random.uniform(k2, (c,), jnp.float32, -bound, bound)
    w2_pt = jax.random.uniform(k3, (c, c, 3, 3), jnp.float32, -bound, bound)
    b2_pt = jax.random.uniform(k4, (c,), jnp.float32, -bound, bound)

    def fold(w_pt):  # (Cout, Cin, 3, 3) -> (9*Cin, Cout), row = (dh*3+dw)*Cin + cin
        return jnp.transpose(w_pt, (2, 3, 1, 0)).reshape(9 * c, c)

    # Conv biases are intentionally omitted from the kernel params: training-mode
    # BatchNorm cancels a per-channel bias exactly (the reference keeps them).
    params = {
        "w1": fold(w1_pt), "w2": fold(w2_pt),
        "g1": jnp.ones((c,), jnp.float32), "be1": jnp.zeros((c,), jnp.float32),
        "g2": jnp.ones((c,), jnp.float32), "be2": jnp.zeros((c,), jnp.float32),
    }
    return params, (w1_pt, b1_pt, w2_pt, b2_pt)


# ----------------------------------------------------------------------------
# Pure-JAX reference (mirrors the PyTorch forward, biases included).
# ----------------------------------------------------------------------------
def reference(x, w1_pt, b1_pt, w2_pt, b2_pt):
    def conv(x, w, b):
        y = jax.lax.conv_general_dilated(
            x, w, window_strides=(1, 1), padding="SAME",
            dimension_numbers=("NCHW", "OIHW", "NCHW"))
        return y + b[None, :, None, None]

    def bn(x):  # training-mode BN with gamma=1, beta=0
        mean = jnp.mean(x, axis=(0, 2, 3), keepdims=True)
        var = jnp.mean((x - mean) ** 2, axis=(0, 2, 3), keepdims=True)
        return (x - mean) * jax.lax.rsqrt(var + EPS)

    y = jnp.maximum(bn(conv(x, w1_pt, b1_pt)), 0.0)
    z = bn(conv(y, w2_pt, b2_pt))
    return z + x


if __name__ == "__main__":
    key = jax.random.PRNGKey(0)
    kx, kparam = jax.random.split(key)

    N, C, H, W = 2, 4, 16, 16
    x = jax.random.normal(kx, (N, C, H, W), jnp.float32)
    params, (w1_pt, b1_pt, w2_pt, b2_pt) = init_params(kparam, C)

    out = residual_block(x, params)
    out = jax.block_until_ready(out)

    ref = reference(x, w1_pt, b1_pt, w2_pt, b2_pt)
    assert out.shape == (N, C, H, W), out.shape
    # bf16 matmul inputs/activations -> compare to the f32 reference at bf16 tolerance.
    max_err = float(jnp.max(jnp.abs(out - ref)))
    assert jnp.allclose(out, ref, atol=5e-2, rtol=5e-2), max_err

    print("KERNEL_OK")
</pallas_src>

<mosaic_0001>
module attributes {stable_mosaic.version = 11 : i64} {
  func.func @kernel(%arg0: i32, %arg1: memref<256x128xf32, #tpu.memory_space<vmem>>, %arg2: memref<1x128xf32, #tpu.memory_space<vmem>>, %arg3: memref<1x128xf32, #tpu.memory_space<vmem>>, %arg4: memref<256x128xbf16, #tpu.memory_space<vmem>>) attributes {dimension_semantics = [#tpu.dimension_semantics<parallel>], iteration_bounds = array<i64: 2>, scalar_prefetch = 0 : i64, scratch_operands = 0 : i64, tpu.core_type = #tpu.core_type<tc>, window_params = [{transform_indices = @transform_0, window_bounds = array<i64: 256, 128>}, {pipeline_mode = #tpu.pipeline_mode<synchronous>, transform_indices = @transform_1, window_bounds = array<i64: 1, 128>}, {pipeline_mode = #tpu.pipeline_mode<synchronous>, transform_indices = @transform_2, window_bounds = array<i64: 1, 128>}, {transform_indices = @transform_3, window_bounds = array<i64: 256, 128>}]} {
    %c0 = arith.constant 0 : index
    %c0_0 = arith.constant 0 : index
    %0 = vector.load %arg1[%c0, %c0_0] : memref<256x128xf32, #tpu.memory_space<vmem>>, vector<256x128xf32>
    %c0_1 = arith.constant 0 : index
    %c0_2 = arith.constant 0 : index
    %1 = vector.load %arg2[%c0_1, %c0_2] : memref<1x128xf32, #tpu.memory_space<vmem>>, vector<1x128xf32>
    %2 = vector.broadcast %1 : vector<1x128xf32> to vector<256x128xf32>
    %3 = arith.mulf %0, %2 : vector<256x128xf32>
    %c0_3 = arith.constant 0 : index
    %c0_4 = arith.constant 0 : index
    %4 = vector.load %arg3[%c0_3, %c0_4] : memref<1x128xf32, #tpu.memory_space<vmem>>, vector<1x128xf32>
    %5 = vector.broadcast %4 : vector<1x128xf32> to vector<256x128xf32>
    %6 = arith.addf %3, %5 : vector<256x128xf32>
    %cst = arith.constant 0.000000e+00 : f32
    %7 = vector.broadcast %cst : f32 to vector<256x128xf32>
    %8 = arith.maximumf %6, %7 : vector<256x128xf32>
    %9 = arith.truncf %8 : vector<256x128xf32> to vector<256x128xbf16>
    %c0_5 = arith.constant 0 : index
    %c0_6 = arith.constant 0 : index
    %10 = vector.load %arg4[%c0_5, %c0_6] : memref<256x128xbf16, #tpu.memory_space<vmem>>, vector<256x128xbf16>
    tpu.vector_store %arg4[%c0_5, %c0_6], %9 {strides = array<i32>} : memref<256x128xbf16, #tpu.memory_space<vmem>>, vector<256x128xbf16>,
    return
  }
  func.func @transform_0(%arg0: i32) -> (i32, i32) {
    %c0_i32 = arith.constant 0 : i32
    %c0_i32_0 = arith.constant 0 : i32
    return %arg0, %c0_i32 : i32, i32
  }
  func.func @transform_1(%arg0: i32) -> (i32, i32) {
    %c0_i32 = arith.constant 0 : i32
    %c0_i32_0 = arith.constant 0 : i32
    %c0_i32_1 = arith.constant 0 : i32
    return %c0_i32, %c0_i32_0 : i32, i32
  }
  func.func @transform_2(%arg0: i32) -> (i32, i32) {
    %c0_i32 = arith.constant 0 : i32
    %c0_i32_0 = arith.constant 0 : i32
    %c0_i32_1 = arith.constant 0 : i32
    return %c0_i32, %c0_i32_0 : i32, i32
  }
  func.func @transform_3(%arg0: i32) -> (i32, i32) {
    %c0_i32 = arith.constant 0 : i32
    %c0_i32_0 = arith.constant 0 : i32
    return %arg0, %c0_i32 : i32, i32
  }
}

module attributes {stable_mosaic.version = 11 : i64} {
  func.func @_conv_stats_kernel(%arg0: i32, %arg1: memref<256x128xbf16, #tpu.memory_space<vmem>>, %arg2: memref<128x128xbf16, #tpu.memory_space<vmem>>, %arg3: memref<256x128xf32, #tpu.memory_space<vmem>>, %arg4: memref<1x128xf32, #tpu.memory_space<vmem>>, %arg5: memref<1x128xf32, #tpu.memory_space<vmem>>) attributes {dimension_semantics = [#tpu.dimension_semantics<arbitrary>], iteration_bounds = array<i64: 2>, scalar_prefetch = 0 : i64, scratch_operands = 0 : i64, tpu.core_type = #tpu.core_type<tc>, window_params = [{transform_indices = @transform_0, window_bounds = array<i64: 256, 128>}, {pipeline_mode = #tpu.pipeline_mode<synchronous>, transform_indices = @transform_1, window_bounds = array<i64: 128, 128>}, {transform_indices = @transform_2, window_bounds = array<i64: 256, 128>}, {pipeline_mode = #tpu.pipeline_mode<synchronous>, transform_indices = @transform_3, window_bounds = array<i64: 1, 128>}, {pipeline_mode = #tpu.pipeline_mode<synchronous>, transform_indices = @transform_4, window_bounds = array<i64: 1, 128>}]} {
    %c0_i32 = arith.constant 0 : i32
    %0 = arith.cmpi eq, %arg0, %c0_i32 : i32
    %1 = arith.extui %0 : i1 to i32
    %c0_i32_0 = arith.constant 0 : i32
    %2 = arith.cmpi ne, %1, %c0_i32_0 : i32
    scf.if %2 {
      %cst_16 = arith.constant 0.000000e+00 : f32
      %18 = vector.broadcast %cst_16 : f32 to vector<1x128xf32>
      %c0_17 = arith.constant 0 : index
      %c0_18 = arith.constant 0 : index
      %19 = vector.load %arg4[%c0_17, %c0_18] : memref<1x128xf32, #tpu.memory_space<vmem>>, vector<1x128xf32>
      tpu.vector_store %arg4[%c0_17, %c0_18], %18 {strides = array<i32>} : memref<1x128xf32, #tpu.memory_space<vmem>>, vector<1x128xf32>,
      %cst_19 = arith.constant 0.000000e+00 : f32
      %20 = vector.broadcast %cst_19 : f32 to vector<1x128xf32>
      %c0_20 = arith.constant 0 : index
      %c0_21 = arith.constant 0 : index
      %21 = vector.load %arg5[%c0_20, %c0_21] : memref<1x128xf32, #tpu.memory_space<vmem>>, vector<1x128xf32>
      tpu.vector_store %arg5[%c0_20, %c0_21], %20 {strides = array<i32>} : memref<1x128xf32, #tpu.memory_space<vmem>>, vector<1x128xf32>,
    } else {
    }
    %c0 = arith.constant 0 : index
    %c0_1 = arith.constant 0 : index
    %3 = vector.load %arg1[%c0, %c0_1] : memref<256x128xbf16, #tpu.memory_space<vmem>>, vector<256x128xbf16>
    %c0_2 = arith.constant 0 : index
    %c0_3 = arith.constant 0 : index
    %4 = vector.load %arg2[%c0_2, %c0_3] : memref<128x128xbf16, #tpu.memory_space<vmem>>, vector<128x128xbf16>
    %cst = arith.constant dense<0.000000e+00> : vector<256x128xf32>
    %5 = tpu.matmul %3, %4, %cst {dimension_numbers = #tpu.dot_dimension_numbers<[1], [0], [0], [1], [0, 0, 1, 1], [], []>} : vector<256x128xbf16>, vector<128x128xbf16>, vector<256x128xf32> -> vector<256x128xf32>
    %c0_4 = arith.constant 0 : index
    %c0_5 = arith.constant 0 : index
    %6 = vector.load %arg3[%c0_4, %c0_5] : memref<256x128xf32, #tpu.memory_space<vmem>>, vector<256x128xf32>
    tpu.vector_store %arg3[%c0_4, %c0_5], %5 {strides = array<i32>} : memref<256x128xf32, #tpu.memory_space<vmem>>, vector<256x128xf32>,
    %c0_6 = arith.constant 0 : index
    %c0_7 = arith.constant 0 : index
    %7 = vector.load %arg4[%c0_6, %c0_7] : memref<1x128xf32, #tpu.memory_space<vmem>>, vector<1x128xf32>
    %cst_8 = arith.constant dense<0.000000e+00> : vector<128xf32>
    %8 = vector.multi_reduction <add>, %5, %cst_8 [0] : vector<256x128xf32> to vector<128xf32>
    %9 = vector.shape_cast %8 : vector<128xf32> to vector<1x128xf32>
    %10 = arith.addf %7, %9 : vector<1x128xf32>
    %c0_9 = arith.constant 0 : index
    %c0_10 = arith.constant 0 : index
    %11 = vector.load %arg4[%c0_9, %c0_10] : memref<1x128xf32, #tpu.memory_space<vmem>>, vector<1x128xf32>
    tpu.vector_store %arg4[%c0_9, %c0_10], %10 {strides = array<i32>} : memref<1x128xf32, #tpu.memory_space<vmem>>, vector<1x128xf32>,
    %c0_11 = arith.constant 0 : index
    %c0_12 = arith.constant 0 : index
    %12 = vector.load %arg5[%c0_11, %c0_12] : memref<1x128xf32, #tpu.memory_space<vmem>>, vector<1x128xf32>
    %13 = arith.mulf %5, %5 : vector<256x128xf32>
    %cst_13 = arith.constant dense<0.000000e+00> : vector<128xf32>
    %14 = vector.multi_reduction <add>, %13, %cst_13 [0] : vector<256x128xf32> to vector<128xf32>
    %15 = vector.shape_cast %14 : vector<128xf32> to vector<1x128xf32>
    %16 = arith.addf %12, %15 : vector<1x128xf32>
    %c0_14 = arith.constant 0 : index
    %c0_15 = arith.constant 0 : index
    %17 = vector.load %arg5[%c0_14, %c0_15] : memref<1x128xf32, #tpu.memory_space<vmem>>, vector<1x128xf32>
    tpu.vector_store %arg5[%c0_14, %c0_15], %16 {strides = array<i32>} : memref<1x128xf32, #tpu.memory_space<vmem>>, vector<1x128xf32>,
    return
  }
  func.func @transform_0(%arg0: i32) -> (i32, i32) {
    %c0_i32 = arith.constant 0 : i32
    %c0_i32_0 = arith.constant 0 : i32
    return %arg0, %c0_i32 : i32, i32
  }
  func.func @transform_1(%arg0: i32) -> (i32, i32) {
    %c0_i32 = arith.constant 0 : i32
    %c0_i32_0 = arith.constant 0 : i32
    %c0_i32_1 = arith.constant 0 : i32
    return %c0_i32, %c0_i32_0 : i32, i32
  }
  func.func @transform_2(%arg0: i32) -> (i32, i32) {
    %c0_i32 = arith.constant 0 : i32
    %c0_i32_0 = arith.constant 0 : i32
    return %arg0, %c0_i32 : i32, i32
  }
  func.func @transform_3(%arg0: i32) -> (i32, i32) {
    %c0_i32 = arith.constant 0 : i32
    %c0_i32_0 = arith.constant 0 : i32
    %c0_i32_1 = arith.constant 0 : i32
    return %c0_i32, %c0_i32_0 : i32, i32
  }
  func.func @transform_4(%arg0: i32) -> (i32, i32) {
    %c0_i32 = arith.constant 0 : i32
    %c0_i32_0 = arith.constant 0 : i32
    %c0_i32_1 = arith.constant 0 : i32
    return %c0_i32, %c0_i32_0 : i32, i32
  }
}

module attributes {stable_mosaic.version = 11 : i64} {
  func.func @kernel(%arg0: i32, %arg1: memref<256x128xf32, #tpu.memory_space<vmem>>, %arg2: memref<1x128xf32, #tpu.memory_space<vmem>>, %arg3: memref<1x128xf32, #tpu.memory_space<vmem>>, %arg4: memref<256x128xf32, #tpu.memory_space<vmem>>, %arg5: memref<256x128xf32, #tpu.memory_space<vmem>>) attributes {dimension_semantics = [#tpu.dimension_semantics<parallel>], iteration_bounds = array<i64: 2>, scalar_prefetch = 0 : i64, scratch_operands = 0 : i64, tpu.core_type = #tpu.core_type<tc>, window_params = [{transform_indices = @transform_0, window_bounds = array<i64: 256, 128>}, {pipeline_mode = #tpu.pipeline_mode<synchronous>, transform_indices = @transform_1, window_bounds = array<i64: 1, 128>}, {pipeline_mode = #tpu.pipeline_mode<synchronous>, transform_indices = @transform_2, window_bounds = array<i64: 1, 128>}, {transform_indices = @transform_3, window_bounds = array<i64: 256, 128>}, {transform_indices = @transform_4, window_bounds = array<i64: 256, 128>}]} {
    %c0 = arith.constant 0 : index
    %c0_0 = arith.constant 0 : index
    %0 = vector.load %arg1[%c0, %c0_0] : memref<256x128xf32, #tpu.memory_space<vmem>>, vector<256x128xf32>
    %c0_1 = arith.constant 0 : index
    %c0_2 = arith.constant 0 : index
    %1 = vector.load %arg2[%c0_1, %c0_2] : memref<1x128xf32, #tpu.memory_space<vmem>>, vector<1x128xf32>
    %2 = vector.broadcast %1 : vector<1x128xf32> to vector<256x128xf32>
    %3 = arith.mulf %0, %2 : vector<256x128xf32>
    %c0_3 = arith.constant 0 : index
    %c0_4 = arith.constant 0 : index
    %4 = vector.load %arg3[%c0_3, %c0_4] : memref<1x128xf32, #tpu.memory_space<vmem>>, vector<1x128xf32>
    %5 = vector.broadcast %4 : vector<1x128xf32> to vector<256x128xf32>
    %6 = arith.addf %3, %5 : vector<256x128xf32>
    %c0_5 = arith.constant 0 : index
    %c0_6 = arith.constant 0 : index
    %7 = vector.load %arg4[%c0_5, %c0_6] : memref<256x128xf32, #tpu.memory_space<vmem>>, vector<256x128xf32>
    %8 = arith.addf %6, %7 : vector<256x128xf32>
    %c0_7 = arith.constant 0 : index
    %c0_8 = arith.constant 0 : index
    %9 = vector.load %arg5[%c0_7, %c0_8] : memref<256x128xf32, #tpu.memory_space<vmem>>, vector<256x128xf32>
    tpu.vector_store %arg5[%c0_7, %c0_8], %8 {strides = array<i32>} : memref<256x128xf32, #tpu.memory_space<vmem>>, vector<256x128xf32>,
    return
  }
  func.func @transform_0(%arg0: i32) -> (i32, i32) {
    %c0_i32 = arith.constant 0 : i32
    %c0_i32_0 = arith.constant 0 : i32
    return %arg0, %c0_i32 : i32, i32
  }
  func.func @transform_1(%arg0: i32) -> (i32, i32) {
    %c0_i32 = arith.constant 0 : i32
    %c0_i32_0 = arith.constant 0 : i32
    %c0_i32_1 = arith.constant 0 : i32
    return %c0_i32, %c0_i32_0 : i32, i32
  }
  func.func @transform_2(%arg0: i32) -> (i32, i32) {
    %c0_i32 = arith.constant 0 : i32
    %c0_i32_0 = arith.constant 0 : i32
    %c0_i32_1 = arith.constant 0 : i32
    return %c0_i32, %c0_i32_0 : i32, i32
  }
  func.func @transform_3(%arg0: i32) -> (i32, i32) {
    %c0_i32 = arith.constant 0 : i32
    %c0_i32_0 = arith.constant 0 : i32
    return %arg0, %c0_i32 : i32, i32
  }
  func.func @transform_4(%arg0: i32) -> (i32, i32) {
    %c0_i32 = arith.constant 0 : i32
    %c0_i32_0 = arith.constant 0 : i32
    return %arg0, %c0_i32 : i32, i32
  }
}

</mosaic_0001>

<llo_original>
// kernel: residual_block.4
$region0: #{residual_block.4}
  #allocation0 [shape = 'u32[]', space=smem, size = 0x4, offset = 0x4, fixed_abs, tag = 'smem constant byte address 0x4 - core index']
  #allocation1 [shape = 'u32[72,128]{1,0:T(1,128)}', space=vmem, size = 0x9000, scoped, tag = 'internal scratch']
  %s0 = inlined_call_operand.vmem [shape: bf16[512,128], index: 0, kind: input, shape index: {}]
  %s1 = inlined_call_operand.vmem [shape: bf16[128,128], index: 1, kind: input, shape index: {}]
  %s2 = inlined_call_operand.vmem [shape: f32[512,128], index: 2, kind: output, shape index: {0}]
  %s3 = inlined_call_operand.vmem [shape: f32[1,128], index: 3, kind: output, shape index: {1}]
  %s4 = inlined_call_operand.vmem [shape: f32[1,128], index: 4, kind: output, shape index: {2}]
  %5 = xla_tuple %s2, %s3, %s4
  %s6 = sld [smem:[#allocation0]]
  $region61: #{residual_block.4} parent=0
    _
  %s8 = ssub.s32 1, %s6
  %s9 = scalar_select 0, %s8, %s6
  loop: start=0, step=1, limit=4
  $region2: #{residual_block.4} parent=0 // loop_pre_header
    _
  $region3: #{residual_block.4} parent=0 // loop_header
    %s11 = sphi 0, %s15
    %p12 = scmp.ge.s32.totalorder %s11, 4
    %s21 = sphi 0, %s23
    %s24 = sphi 0, %s21
    %s25 = sphi 0, %s24
    %s41 = sphi 0, %s25
    %s45 = sphi 0, %s45
    %s47 = sphi 0, %s45
    %s48 = sphi 0, %s47
    %s62 = sphi 0, %s48
    %s68 = sphi 0, %s70
    %s71 = sphi 0, %s68
    %s72 = sphi 0, %s71
    %s88 = sphi 0, %s72
    %s92 = sphi 0, %s92
    %s94 = sphi 0, %s92
    %s95 = sphi 0, %s94
    %s109 = sphi 0, %s95
    %s113 = sphi 0, %s113
    %s115 = sphi 0, %s113
    %s116 = sphi 0, %s115
    %s130 = sphi 0, %s116
  $region4: #{residual_block.4} parent=0 // loop_header_branch
    %14 = sbr.rel (%p12) target = $region8
  $region5: #{residual_block.4} parent=0 // loop_body
    %s16 = ssub.s32 %s11, 1
    %s17 = ssub.s32 %s11, 2
    %s18 = sadd.s32 %s11, 1
    %s19 = ssub.s32 %s11, %s18
    %p20 = scmp.eq.s32.totalorder %s19, 0
    %s22 = sadd.s32 %s21, 1
    %s23 = scalar_select %p20, %s21, %s22
    %p26 = pneg %p20
    %p27 = scmp.eq.s32.totalorder %s11, 1
    %p28 = por %p26, %p27
    %p29 = scmp.ne.s32.totalorder %s21, %s24
    %p30 = scmp.eq.s32.totalorder %s11, 0
    %p31 = por %p29, %p30
    %p32 = scmp.ne.s32.totalorder %s21, %s24
    %p33 = scmp.eq.s32.totalorder %s16, 1
    %p34 = por %p32, %p33
    %p35 = scmp.ne.s32.totalorder %s24, %s25
    %p36 = scmp.eq.s32.totalorder %s16, 0
    %p37 = por %p35, %p36
    %p38 = scmp.ne.s32.totalorder %s24, %s25
    %p39 = scmp.eq.s32.totalorder %s17, 1
    %p40 = por %p38, %p39
    %p42 = scmp.ne.s32.totalorder %s25, %s41
    %p43 = scmp.eq.s32.totalorder %s17, 0
    %p44 = por %p42, %p43
    %s46 = sadd.s32 %s45, 1
    %p49 = scmp.eq.s32.totalorder %s11, 1
    %p50 = scmp.ne.s32.totalorder %s45, %s47
    %p51 = scmp.eq.s32.totalorder %s11, 0
    %p52 = por %p50, %p51
    %p53 = scmp.ne.s32.totalorder %s45, %s47
    %p54 = scmp.eq.s32.totalorder %s16, 1
    %p55 = por %p53, %p54
    %p56 = scmp.ne.s32.totalorder %s47, %s48
    %p57 = scmp.eq.s32.totalorder %s16, 0
    %p58 = por %p56, %p57
    %p59 = scmp.ne.s32.totalorder %s47, %s48
    %p60 = scmp.eq.s32.totalorder %s17, 1
    %p61 = por %p59, %p60
    %p63 = scmp.ne.s32.totalorder %s48, %s62
    %p64 = scmp.eq.s32.totalorder %s17, 0
    %p65 = por %p63, %p64
    %s66 = ssub.s32 %s11, %s18
    %p67 = scmp.eq.s32.totalorder %s66, 0
    %s69 = sadd.s32 %s68, 1
    %s70 = scalar_select %p67, %s68, %s69
    %p73 = pneg %p67
    %p74 = scmp.eq.s32.totalorder %s11, 1
    %p75 = por %p73, %p74
    %p76 = scmp.ne.s32.totalorder %s68, %s71
    %p77 = scmp.eq.s32.totalorder %s11, 0
    %p78 = por %p76, %p77
    %p79 = scmp.ne.s32.totalorder %s68, %s71
    %p80 = scmp.eq.s32.totalorder %s16, 1
    %p81 = por %p79, %p80
    %p82 = scmp.ne.s32.totalorder %s71, %s72
    %p83 = scmp.eq.s32.totalorder %s16, 0
    %p84 = por %p82, %p83
    %p85 = scmp.ne.s32.totalorder %s71, %s72
    %p86 = scmp.eq.s32.totalorder %s17, 1
    %p87 = por %p85, %p86
    %p89 = scmp.ne.s32.totalorder %s72, %s88
    %p90 = scmp.eq.s32.totalorder %s17, 0
    %p91 = por %p89, %p90
    %s93 = sadd.s32 %s92, 1
    %p96 = scmp.eq.s32.totalorder %s11, 1
    %p97 = scmp.ne.s32.totalorder %s92, %s94
    %p98 = scmp.eq.s32.totalorder %s11, 0
    %p99 = por %p97, %p98
    %p100 = scmp.ne.s32.totalorder %s92, %s94
    %p101 = scmp.eq.s32.totalorder %s16, 1
    %p102 = por %p100, %p101
    %p103 = scmp.ne.s32.totalorder %s94, %s95
    %p104 = scmp.eq.s32.totalorder %s16, 0
    %p105 = por %p103, %p104
    %p106 = scmp.ne.s32.totalorder %s94, %s95
    %p107 = scmp.eq.s32.totalorder %s17, 1
    %p108 = por %p106, %p107
    %p110 = scmp.ne.s32.totalorder %s95, %s109
    %p111 = scmp.eq.s32.totalorder %s17, 0
    %p112 = por %p110, %p111
    %s114 = sadd.s32 %s113, 1
    %p117 = scmp.eq.s32.totalorder %s11, 1
    %p118 = scmp.ne.s32.totalorder %s113, %s115
    %p119 = scmp.eq.s32.totalorder %s11, 0
    %p120 = por %p118, %p119
    %p121 = scmp.ne.s32.totalorder %s113, %s115
    %p122 = scmp.eq.s32.totalorder %s16, 1
    %p123 = por %p121, %p122
    %p124 = scmp.ne.s32.totalorder %s115, %s116
    %p125 = scmp.eq.s32.totalorder %s16, 0
    %p126 = por %p124, %p125
    %p127 = scmp.ne.s32.totalorder %s115, %s116
    %p128 = scmp.eq.s32.totalorder %s17, 1
    %p129 = por %p127, %p128
    %p131 = scmp.ne.s32.totalorder %s116, %s130
    %p132 = scmp.eq.s32.totalorder %s17, 0
    %p133 = por %p131, %p132
    %p134 = scmp.le.s32.totalorder 1, %s11
    %p135 = scmp.lt.s32.totalorder %s11, 3
    %p136 = pnand %p134, %p135
    %p137 = pneg %p136
    // Predicated region
    $region9: #{residual_block.4} parent=5 // pred_check
      _
    $region10: #{residual_block.4} parent=5 // pred_check_branch
      %139 = sbr.rel (%p136) target = $region12
    $region11: #{residual_block.4} parent=5 // pred_region
      %s140 = ssub.s32 %s11, 1
      // Predicated region
      $region13: #{residual_block.4} parent=11 // pred_check
        %p141 = pneg %p58
      $region14: #{residual_block.4} parent=11 // pred_check_branch
        %143 = sbr.rel (%p141) target = $region16
      $region15: #{residual_block.4} parent=11 // pred_region
        _
      $region16: #{residual_block.4} parent=11 // pred_fallthru
        _
    $region12: #{residual_block.4} parent=5 // pred_fallthru
      _
    %p144 = scmp.lt.s32.totalorder %s11, 2
    // Predicated region
    $region17: #{residual_block.4} parent=5 // pred_check
      %p145 = pneg %p144
    $region18: #{residual_block.4} parent=5 // pred_check_branch
      %147 = sbr.rel (%p145) target = $region20
    $region19: #{residual_block.4} parent=5 // pred_region
      // Predicated region
      $region21: #{residual_block.4} parent=19 // pred_check
        %p148 = pneg %p31
      $region22: #{residual_block.4} parent=19 // pred_check_branch
        %150 = sbr.rel (%p148) target = $region24
      $region23: #{residual_block.4} parent=19 // pred_region
        %s151 = smul.u32 32, %s11
        %p152 = scmp.lt.s32.totalorder %s151, 63
        %s153 = scalar_select %p152, %s151, 63
        %s154 = smul.addr %s153, 4
        %s155 = scalar_lea.vmem %s0, %s154
        %s156 = smul.u32 32, %s11
      $region24: #{residual_block.4} parent=19 // pred_fallthru
        _
    $region20: #{residual_block.4} parent=5 // pred_fallthru
      _
    %p157 = scmp.le.s32.totalorder 1, %s11
    %p158 = scmp.lt.s32.totalorder %s11, 3
    %p159 = pnand %p157, %p158
    %p160 = pneg %p159
    // Predicated region
    $region25: #{residual_block.4} parent=5 // pred_check
      _
    $region26: #{residual_block.4} parent=5 // pred_check_branch
      %162 = sbr.rel (%p159) target = $region28
    $region27: #{residual_block.4} parent=5 // pred_region
      %s163 = ssub.s32 %s11, 1
      %s164 = smul.u32 32, %s16
      %p165 = scmp.lt.s32.totalorder %s164, 63
      %s166 = scalar_select %p165, %s164, 63
      %s167 = smul.addr %s166, 4
      %s168 = scalar_lea.vmem %s0, %s167
      %p169 = pneg %p37
      %p170 = pneg %p34
      %p171 = pneg %p58
      %p172 = pneg %p55
      %p173 = pneg %p84
      %p174 = pneg %p81
      %s175 = smul.u32 32, %s16
      %p176 = scmp.lt.s32.totalorder %s175, 63
      %s177 = scalar_select %p176, %s175, 63
      %s178 = smul.addr %s177, 8
      %s179 = scalar_lea.vmem %s2, %s178
      %p180 = pneg %p105
      %p181 = pneg %p102
      %p182 = pneg %p126
      %p183 = pneg %p123
      %s184 = smul.u32 32, %s16
      %p185 = scmp.lt.s32.totalorder %s184, 63
      %s186 = scalar_select %p185, %s184, 63
      %s187 = smul.addr %s186, 4
      %s188 = scalar_lea.vmem %s0, %s187
      %s189 = smul.u32 32, %s16
      %s190 = smul.u32 32, %s16
      %p191 = scmp.lt.s32.totalorder %s190, 63
      %s192 = scalar_select %p191, %s190, 63
      %s193 = smul.addr %s192, 8
      %s194 = scalar_lea.vmem %s2, %s193
      %s195 = smul.u32 32, %s16
      %p196 = scmp.eq.s32.totalorder %s16, 0
      // Predicated region
      $region29: #{residual_block.4} parent=27 // pred_check
        %p197 = pneg %p196
      $region30: #{residual_block.4} parent=27 // pred_check_branch
        %199 = sbr.rel (%p197) target = $region32
      $region31: #{residual_block.4} parent=27 // pred_region
        %200 = vst [vmem:[%s3] sm:$0x1] 0.0
        %201 = vst [vmem:[%s4] sm:$0x1] 0.0
      $region32: #{residual_block.4} parent=27 // pred_fallthru
        _
      %v202 = vld [vmem:[%s188] sm:$0xf]
      %v203 = vld [vmem:[%s188 + $0x4] sm:$0xf]
      %v204 = vld [vmem:[%s188 + $0x8] sm:$0xf]
      %v205 = vld [vmem:[%s188 + $0xc] sm:$0xf]
      %v206 = vld [vmem:[%s188 + $0x10] sm:$0xf]
      %v207 = vld [vmem:[%s188 + $0x14] sm:$0xf]
      %v208 = vld [vmem:[%s188 + $0x18] sm:$0xf]
      %v209 = vld [vmem:[%s188 + $0x1c] sm:$0xf]
      %v210 = vld [vmem:[%s188 + $0x20] sm:$0xf]
      %v211 = vld [vmem:[%s188 + $0x24] sm:$0xf]
      %v212 = vld [vmem:[%s188 + $0x28] sm:$0xf]
      %v213 = vld [vmem:[%s188 + $0x2c] sm:$0xf]
      %v214 = vld [vmem:[%s188 + $0x30] sm:$0xf]
      %v215 = vld [vmem:[%s188 + $0x34] sm:$0xf]
      %v216 = vld [vmem:[%s188 + $0x38] sm:$0xf]
      %v217 = vld [vmem:[%s188 + $0x3c] sm:$0xf]
      %v218 = vld [vmem:[%s188 + $0x40] sm:$0xf]
      %v219 = vld [vmem:[%s188 + $0x44] sm:$0xf]
      %v220 = vld [vmem:[%s188 + $0x48] sm:$0xf]
      %v221 = vld [vmem:[%s188 + $0x4c] sm:$0xf]
      %v222 = vld [vmem:[%s188 + $0x50] sm:$0xf]
      %v223 = vld [vmem:[%s188 + $0x54] sm:$0xf]
      %v224 = vld [vmem:[%s188 + $0x58] sm:$0xf]
      %v225 = vld [vmem:[%s188 + $0x5c] sm:$0xf]
      %v226 = vld [vmem:[%s188 + $0x60] sm:$0xf]
      %v227 = vld [vmem:[%s188 + $0x64] sm:$0xf]
      %v228 = vld [vmem:[%s188 + $0x68] sm:$0xf]
      %v229 = vld [vmem:[%s188 + $0x6c] sm:$0xf]
      %v230 = vld [vmem:[%s188 + $0x70] sm:$0xf]
      %v231 = vld [vmem:[%s188 + $0x74] sm:$0xf]
      %v232 = vld [vmem:[%s188 + $0x78] sm:$0xf]
      %v233 = vld [vmem:[%s188 + $0x7c] sm:$0xf]
      %v234 = vld [vmem:[%s1] sm:$0xf]
      %v235 = vld [vmem:[%s1 + $0x4] sm:$0xf]
      %v236 = vld [vmem:[%s1 + $0x8] sm:$0xf]
      %v237 = vld [vmem:[%s1 + $0xc] sm:$0xf]
      %v238 = vld [vmem:[%s1 + $0x10] sm:$0xf]
      %v239 = vld [vmem:[%s1 + $0x14] sm:$0xf]
      %v240 = vld [vmem:[%s1 + $0x18] sm:$0xf]
      %v241 = vld [vmem:[%s1 + $0x1c] sm:$0xf]
      %v242 = vld [vmem:[%s1 + $0x20] sm:$0xf]
      %v243 = vld [vmem:[%s1 + $0x24] sm:$0xf]
      %v244 = vld [vmem:[%s1 + $0x28] sm:$0xf]
      %v245 = vld [vmem:[%s1 + $0x2c] sm:$0xf]
      %v246 = vld [vmem:[%s1 + $0x30] sm:$0xf]
      %v247 = vld [vmem:[%s1 + $0x34] sm:$0xf]
      %v248 = vld [vmem:[%s1 + $0x38] sm:$0xf]
      %v249 = vld [vmem:[%s1 + $0x3c] sm:$0xf]
      %v282 = vunpack.c.l.b16 %v202
      %v283 = vunpack.c.l.b16 %v203
      %v284 = vunpack.c.l.b16 %v204
      %v285 = vunpack.c.l.b16 %v205
      %v286 = vunpack.c.l.b16 %v206
      %v287 = vunpack.c.l.b16 %v207
      %v288 = vunpack.c.l.b16 %v208
      %v289 = vunpack.c.l.b16 %v209
      %v290 = vunpack.c.l.b16 %v210
      %v291 = vunpack.c.l.b16 %v211
      %v292 = vunpack.c.l.b16 %v212
      %v293 = vunpack.c.l.b16 %v213
      %v294 = vunpack.c.l.b16 %v214
      %v295 = vunpack.c.l.b16 %v215
      %v296 = vunpack.c.l.b16 %v216
      %v297 = vunpack.c.l.b16 %v217
      %v298 = vunpack.c.l.b16 %v218
      %v299 = vunpack.c.l.b16 %v219
      %v300 = vunpack.c.l.b16 %v220
      %v301 = vunpack.c.l.b16 %v221
      %v302 = vunpack.c.l.b16 %v222
      %v303 = vunpack.c.l.b16 %v223
      %v304 = vunpack.c.l.b16 %v224
      %v305 = vunpack.c.l.b16 %v225
      %v306 = vunpack.c.l.b16 %v226
      %v307 = vunpack.c.l.b16 %v227
      %v308 = vunpack.c.l.b16 %v228
      %v309 = vunpack.c.l.b16 %v229
      %v310 = vunpack.c.l.b16 %v230
      %v311 = vunpack.c.l.b16 %v231
      %v312 = vunpack.c.l.b16 %v232
      %v313 = vunpack.c.l.b16 %v233
      %v314 = vpack.c.b16 %v283, %v282
      %v315 = vpack.c.b16 %v285, %v284
      %v316 = vpack.c.b16 %v287, %v286
      %v317 = vpack.c.b16 %v289, %v288
      %v318 = vpack.c.b16 %v291, %v290
      %v319 = vpack.c.b16 %v293, %v292
      %v320 = vpack.c.b16 %v295, %v294
      %v321 = vpack.c.b16 %v297, %v296
      %v322 = vpack.c.b16 %v299, %v298
      %v323 = vpack.c.b16 %v301, %v300
      %v324 = vpack.c.b16 %v303, %v302
      %v325 = vpack.c.b16 %v305, %v304
      %v326 = vpack.c.b16 %v307, %v306
      %v327 = vpack.c.b16 %v309, %v308
      %v328 = vpack.c.b16 %v311, %v310
      %v329 = vpack.c.b16 %v313, %v312
      %v362 = vunpack.c.l.b16 %v234
      %v363 = vunpack.c.l.b16 %v235
      %v364 = vunpack.c.l.b16 %v236
      %v365 = vunpack.c.l.b16 %v237
      %v366 = vunpack.c.l.b16 %v238
      %v367 = vunpack.c.l.b16 %v239
      %v368 = vunpack.c.l.b16 %v240
      %v369 = vunpack.c.l.b16 %v241
      %v370 = vunpack.c.l.b16 %v242
      %v371 = vunpack.c.l.b16 %v243
      %v372 = vunpack.c.l.b16 %v244
      %v373 = vunpack.c.l.b16 %v245
      %v374 = vunpack.c.l.b16 %v246
      %v375 = vunpack.c.l.b16 %v247
      %v376 = vunpack.c.l.b16 %v248
      %v377 = vunpack.c.l.b16 %v249
      %v378 = vpack.c.b16 %v363, %v362
      %v379 = vpack.c.b16 %v365, %v364
      %v380 = vpack.c.b16 %v367, %v366
      %v381 = vpack.c.b16 %v369, %v368
      %v382 = vpack.c.b16 %v371, %v370
      %v383 = vpack.c.b16 %v373, %v372
      %v384 = vpack.c.b16 %v375, %v374
      %v385 = vpack.c.b16 %v377, %v376
      %394 = vmatpush.bf16.msra.mxu0 %v385
      %395 = vmatpush.bf16.msra.mxu0 %v384
      %396 = vmatpush.bf16.msra.mxu0 %v383
      %397 = vmatpush.bf16.msra.mxu0 %v382
      %398 = vmatpush.bf16.msra.mxu0 %v381
      %399 = vmatpush.bf16.msra.mxu0 %v380
      %400 = vmatpush.bf16.msra.mxu0 %v379
      %401 = vmatpush.bf16.msra.mxu0 %v378
      %402 = vmatmul.bf16.gmra.mxu0 %v314
      %v403 = vpop.f32.mrf.mxu0
      %v404 = vadd.f32 0.0, %v403
      %v405 = vpop.f32.mrf.mxu0
      %v406 = vadd.f32 0.0, %v405
      %407 = vmatmul.bf16.gmra.mxu0 %v315
      %v408 = vpop.f32.mrf.mxu0
      %v409 = vadd.f32 0.0, %v408
      %v410 = vpop.f32.mrf.mxu0
      %v411 = vadd.f32 0.0, %v410
      %412 = vmatmul.bf16.gmra.mxu0 %v316
      %v413 = vpop.f32.mrf.mxu0
      %v414 = vadd.f32 0.0, %v413
      %v415 = vpop.f32.mrf.mxu0
      %v416 = vadd.f32 0.0, %v415
      %417 = vmatmul.bf16.gmra.mxu0 %v317
      %v418 = vpop.f32.mrf.mxu0
      %v419 = vadd.f32 0.0, %v418
      %v420 = vpop.f32.mrf.mxu0
      %v421 = vadd.f32 0.0, %v420
      %422 = vmatmul.bf16.gmra.mxu0 %v318
      %v423 = vpop.f32.mrf.mxu0
      %v424 = vadd.f32 0.0, %v423
      %v425 = vpop.f32.mrf.mxu0
      %v426 = vadd.f32 0.0, %v425
      %427 = vmatmul.bf16.gmra.mxu0 %v319
      %v428 = vpop.f32.mrf.mxu0
      %v429 = vadd.f32 0.0, %v428
      %v430 = vpop.f32.mrf.mxu0
      %v431 = vadd.f32 0.0, %v430
      %432 = vmatmul.bf16.gmra.mxu0 %v320
      %v433 = vpop.f32.mrf.mxu0
      %v434 = vadd.f32 0.0, %v433
      %v435 = vpop.f32.mrf.mxu0
      %v436 = vadd.f32 0.0, %v435
      %437 = vmatmul.bf16.gmra.mxu0 %v321
      %v438 = vpop.f32.mrf.mxu0
      %v439 = vadd.f32 0.0, %v438
      %v440 = vpop.f32.mrf.mxu0
      %v441 = vadd.f32 0.0, %v440
      %442 = vmatmul.bf16.gmra.mxu0 %v322
      %v443 = vpop.f32.mrf.mxu0
      %v444 = vadd.f32 0.0, %v443
      %v445 = vpop.f32.mrf.mxu0
      %v446 = vadd.f32 0.0, %v445
      %447 = vmatmul.bf16.gmra.mxu0 %v323
      %v448 = vpop.f32.mrf.mxu0
      %v449 = vadd.f32 0.0, %v448
      %v450 = vpop.f32.mrf.mxu0
      %v451 = vadd.f32 0.0, %v450
      %452 = vmatmul.bf16.gmra.mxu0 %v324
      %v453 = vpop.f32.mrf.mxu0
      %v454 = vadd.f32 0.0, %v453
      %v455 = vpop.f32.mrf.mxu0
      %v456 = vadd.f32 0.0, %v455
      %457 = vmatmul.bf16.gmra.mxu0 %v325
      %v458 = vpop.f32.mrf.mxu0
      %v459 = vadd.f32 0.0, %v458
      %v460 = vpop.f32.mrf.mxu0
      %v461 = vadd.f32 0.0, %v460
      %462 = vmatmul.bf16.gmra.mxu0 %v326
      %v463 = vpop.f32.mrf.mxu0
      %v464 = vadd.f32 0.0, %v463
      %v465 = vpop.f32.mrf.mxu0
      %v466 = vadd.f32 0.0, %v465
      %467 = vmatmul.bf16.gmra.mxu0 %v327
      %v468 = vpop.f32.mrf.mxu0
      %v469 = vadd.f32 0.0, %v468
      %v470 = vpop.f32.mrf.mxu0
      %v471 = vadd.f32 0.0, %v470
      %472 = vmatmul.bf16.gmra.mxu0 %v328
      %v473 = vpop.f32.mrf.mxu0
      %v474 = vadd.f32 0.0, %v473
      %v475 = vpop.f32.mrf.mxu0
      %v476 = vadd.f32 0.0, %v475
      %477 = vmatmul.bf16.gmra.mxu0 %v329
      %v478 = vpop.f32.mrf.mxu0
      %v479 = vadd.f32 0.0, %v478
      %v480 = vpop.f32.mrf.mxu0
      %v481 = vadd.f32 0.0, %v480
      %482 = vdwg.mxu0
      %483 = vst [vmem:[%s194] sm:$0xff] %v404
      %484 = vst [vmem:[%s194 + $0x8] sm:$0xff] %v406
      %485 = vst [vmem:[%s194 + $0x10] sm:$0xff] %v409
      %486 = vst [vmem:[%s194 + $0x18] sm:$0xff] %v411
      %487 = vst [vmem:[%s194 + $0x20] sm:$0xff] %v414
      %488 = vst [vmem:[%s194 + $0x28] sm:$0xff] %v416
      %489 = vst [vmem:[%s194 + $0x30] sm:$0xff] %v419
      %490 = vst [vmem:[%s194 + $0x38] sm:$0xff] %v421
      %491 = vst [vmem:[%s194 + $0x40] sm:$0xff] %v424
      %492 = vst [vmem:[%s194 + $0x48] sm:$0xff] %v426
      %493 = vst [vmem:[%s194 + $0x50] sm:$0xff] %v429
      %494 = vst [vmem:[%s194 + $0x58] sm:$0xff] %v431
      %495 = vst [vmem:[%s194 + $0x60] sm:$0xff] %v434
      %496 = vst [vmem:[%s194 + $0x68] sm:$0xff] %v436
      %497 = vst [vmem:[%s194 + $0x70] sm:$0xff] %v439
      %498 = vst [vmem:[%s194 + $0x78] sm:$0xff] %v441
      %499 = vst [vmem:[%s194 + $0x80] sm:$0xff] %v444
      %500 = vst [vmem:[%s194 + $0x88] sm:$0xff] %v446
      %501 = vst [vmem:[%s194 + $0x90] sm:$0xff] %v449
      %502 = vst [vmem:[%s194 + $0x98] sm:$0xff] %v451
      %503 = vst [vmem:[%s194 + $0xa0] sm:$0xff] %v454
      %504 = vst [vmem:[%s194 + $0xa8] sm:$0xff] %v456
      %505 = vst [vmem:[%s194 + $0xb0] sm:$0xff] %v459
      %506 = vst [vmem:[%s194 + $0xb8] sm:$0xff] %v461
      %507 = vst [vmem:[%s194 + $0xc0] sm:$0xff] %v464
      %508 = vst [vmem:[%s194 + $0xc8] sm:$0xff] %v466
      %509 = vst [vmem:[%s194 + $0xd0] sm:$0xff] %v469
      %510 = vst [vmem:[%s194 + $0xd8] sm:$0xff] %v471
      %511 = vst [vmem:[%s194 + $0xe0] sm:$0xff] %v474
      %512 = vst [vmem:[%s194 + $0xe8] sm:$0xff] %v476
      %513 = vst [vmem:[%s194 + $0xf0] sm:$0xff] %v479
      %514 = vst [vmem:[%s194 + $0xf8] sm:$0xff] %v481
      %v515 = vld [vmem:[%s3] sm:$0x1]
      %v516 = vadd.f32 %v404, %v406
      %v517 = vadd.f32 %v516, %v409
      %v518 = vadd.f32 %v517, %v411
      %v519 = vadd.f32 %v518, %v414
      %v520 = vadd.f32 %v519, %v416
      %v521 = vadd.f32 %v520, %v419
      %v522 = vadd.f32 %v521, %v421
      %v523 = vadd.f32 %v522, %v424
      %v524 = vadd.f32 %v523, %v426
      %v525 = vadd.f32 %v524, %v429
      %v526 = vadd.f32 %v525, %v431
      %v527 = vadd.f32 %v526, %v434
      %v528 = vadd.f32 %v527, %v436
      %v529 = vadd.f32 %v528, %v439
      %v530 = vadd.f32 %v529, %v441
      %v531 = vadd.f32 %v530, %v444
      %v532 = vadd.f32 %v531, %v446
      %v533 = vadd.f32 %v532, %v449
      %v534 = vadd.f32 %v533, %v451
      %v535 = vadd.f32 %v534, %v454
      %v536 = vadd.f32 %v535, %v456
      %v537 = vadd.f32 %v536, %v459
      %v538 = vadd.f32 %v537, %v461
      %v539 = vadd.f32 %v538, %v464
      %v540 = vadd.f32 %v539, %v466
      %v541 = vadd.f32 %v540, %v469
      %v542 = vadd.f32 %v541, %v471
      %v543 = vadd.f32 %v542, %v474
      %v544 = vadd.f32 %v543, %v476
      %v545 = vadd.f32 %v544, %v479
      %v546 = vadd.f32 %v545, %v481
      %v547 = vrot.slane %v546, 4
      %v548 = vadd.f32 %v546, %v547
      %v549 = vrot.slane %v548, 2
      %v550 = vadd.f32 %v548, %v549
      %v551 = vrot.slane %v550, 1
      %v552 = vadd.f32 %v550, %v551
      %v553 = vadd.f32 %v515, %v552
      %554 = vst [vmem:[%s3] sm:$0x1] %v553
      %v555 = vld [vmem:[%s4] sm:$0x1]
      %v556 = vmul.f32 %v404, %v404
      %v557 = vmul.f32 %v406, %v406
      %v558 = vmul.f32 %v409, %v409
      %v559 = vmul.f32 %v411, %v411
      %v560 = vmul.f32 %v414, %v414
      %v561 = vmul.f32 %v416, %v416
      %v562 = vmul.f32 %v419, %v419
      %v563 = vmul.f32 %v421, %v421
      %v564 = vmul.f32 %v424, %v424
      %v565 = vmul.f32 %v426, %v426
      %v566 = vmul.f32 %v429, %v429
      %v567 = vmul.f32 %v431, %v431
      %v568 = vmul.f32 %v434, %v434
      %v569 = vmul.f32 %v436, %v436
      %v570 = vmul.f32 %v439, %v439
      %v571 = vmul.f32 %v441, %v441
      %v572 = vmul.f32 %v444, %v444
      %v573 = vmul.f32 %v446, %v446
      %v574 = vmul.f32 %v449, %v449
      %v575 = vmul.f32 %v451, %v451
      %v576 = vmul.f32 %v454, %v454
      %v577 = vmul.f32 %v456, %v456
      %v578 = vmul.f32 %v459, %v459
      %v579 = vmul.f32 %v461, %v461
      %v580 = vmul.f32 %v464, %v464
      %v581 = vmul.f32 %v466, %v466
      %v582 = vmul.f32 %v469, %v469
      %v583 = vmul.f32 %v471, %v471
      %v584 = vmul.f32 %v474, %v474
      %v585 = vmul.f32 %v476, %v476
      %v586 = vmul.f32 %v479, %v479
      %v587 = vmul.f32 %v481, %v481
      %v588 = vadd.f32 %v556, %v557
      %v589 = vadd.f32 %v588, %v558
      %v590 = vadd.f32 %v589, %v559
      %v591 = vadd.f32 %v590, %v560
      %v592 = vadd.f32 %v591, %v561
      %v593 = vadd.f32 %v592, %v562
      %v594 = vadd.f32 %v593, %v563
      %v595 = vadd.f32 %v594, %v564
      %v596 = vadd.f32 %v595, %v565
      %v597 = vadd.f32 %v596, %v566
      %v598 = vadd.f32 %v597, %v567
      %v599 = vadd.f32 %v598, %v568
      %v600 = vadd.f32 %v599, %v569
      %v601 = vadd.f32 %v600, %v570
      %v602 = vadd.f32 %v601, %v571
      %v603 = vadd.f32 %v602, %v572
      %v604 = vadd.f32 %v603, %v573
      %v605 = vadd.f32 %v604, %v574
      %v606 = vadd.f32 %v605, %v575
      %v607 = vadd.f32 %v606, %v576
      %v608 = vadd.f32 %v607, %v577
      %v609 = vadd.f32 %v608, %v578
      %v610 = vadd.f32 %v609, %v579
      %v611 = vadd.f32 %v610, %v580
      %v612 = vadd.f32 %v611, %v581
      %v613 = vadd.f32 %v612, %v582
      %v614 = vadd.f32 %v613, %v583
      %v615 = vadd.f32 %v614, %v584
      %v616 = vadd.f32 %v615, %v585
      %v617 = vadd.f32 %v616, %v586
      %v618 = vadd.f32 %v617, %v587
      %v619 = vrot.slane %v618, 4
      %v620 = vadd.f32 %v618, %v619
      %v621 = vrot.slane %v620, 2
      %v622 = vadd.f32 %v620, %v621
      %v623 = vrot.slane %v622, 1
      %v624 = vadd.f32 %v622, %v623
      %v625 = vadd.f32 %v555, %v624
      %626 = vst [vmem:[%s4] sm:$0x1] %v625
      %s627 = smul.u32 32, %s16
      %p628 = scmp.lt.s32.totalorder %s627, 63
      %s629 = scalar_select %p628, %s627, 63
      %s630 = smul.addr %s629, 8
      %s631 = scalar_lea.vmem %s2, %s630
      // Predicated region
      $region33: #{residual_block.4} parent=27 // pred_check
        %p632 = pneg %p81
      $region34: #{residual_block.4} parent=27 // pred_check_branch
        %634 = sbr.rel (%p632) target = $region36
      $region35: #{residual_block.4} parent=27 // pred_region
        %s635 = smul.u32 32, %s16
      $region36: #{residual_block.4} parent=27 // pred_fallthru
        _
      // Predicated region
      $region37: #{residual_block.4} parent=27 // pred_check
        %p636 = pneg %p102
      $region38: #{residual_block.4} parent=27 // pred_check_branch
        %638 = sbr.rel (%p636) target = $region40
      $region39: #{residual_block.4} parent=27 // pred_region
        _
      $region40: #{residual_block.4} parent=27 // pred_fallthru
        _
      // Predicated region
      $region41: #{residual_block.4} parent=27 // pred_check
        %p639 = pneg %p123
      $region42: #{residual_block.4} parent=27 // pred_check_branch
        %641 = sbr.rel (%p639) target = $region44
      $region43: #{residual_block.4} parent=27 // pred_region
        _
      $region44: #{residual_block.4} parent=27 // pred_fallthru
        _
      // Predicated region
      $region45: #{residual_block.4} parent=27 // pred_check
        %p642 = pneg %p102
      $region46: #{residual_block.4} parent=27 // pred_check_branch
        %644 = sbr.rel (%p642) target = $region48
      $region47: #{residual_block.4} parent=27 // pred_region
        _
      $region48: #{residual_block.4} parent=27 // pred_fallthru
        _
      // Predicated region
      $region49: #{residual_block.4} parent=27 // pred_check
        %p645 = pneg %p123
      $region50: #{residual_block.4} parent=27 // pred_check_branch
        %647 = sbr.rel (%p645) target = $region52
      $region51: #{residual_block.4} parent=27 // pred_region
        _
      $region52: #{residual_block.4} parent=27 // pred_fallthru
        _
    $region28: #{residual_block.4} parent=5 // pred_fallthru
      _
    %p648 = scmp.le.s32.totalorder 2, %s11
    // Predicated region
    $region53: #{residual_block.4} parent=5 // pred_check
      %p649 = pneg %p648
    $region54: #{residual_block.4} parent=5 // pred_check_branch
      %651 = sbr.rel (%p649) target = $region56
    $region55: #{residual_block.4} parent=5 // pred_region
      %s652 = ssub.s32 %s11, 2
      // Predicated region
      $region57: #{residual_block.4} parent=55 // pred_check
        %p653 = pneg %p87
      $region58: #{residual_block.4} parent=55 // pred_check_branch
        %655 = sbr.rel (%p653) target = $region60
      $region59: #{residual_block.4} parent=55 // pred_region
        %s656 = smul.u32 32, %s17
        %p657 = scmp.lt.s32.totalorder %s656, 63
        %s658 = scalar_select %p657, %s656, 63
        %s659 = smul.addr %s658, 8
        %s660 = scalar_lea.vmem %s2, %s659
      $region60: #{residual_block.4} parent=55 // pred_fallthru
        _
    $region56: #{residual_block.4} parent=5 // pred_fallthru
      _
  $region6: #{residual_block.4} parent=0 // loop_footer
    %s15 = sadd.s32 1, %s11
  $region7: #{residual_block.4} parent=0 // loop_footer_branch
    %10 = sbr.rel target = $region3
  $region8: #{residual_block.4} parent=0 // loop_exit
    _

// kernel: residual_block.5
$region0: #{residual_block.5}
  #allocation0 [shape = 'u32[]', space=smem, size = 0x4, offset = 0x4, fixed_abs, tag = 'smem constant byte address 0x4 - core index']
  #allocation1 [shape = 'u32[72,128]{1,0:T(1,128)}', space=vmem, size = 0x9000, scoped, tag = 'internal scratch']
  %s0 = inlined_call_operand.vmem [shape: f32[512,128], index: 0, kind: input, shape index: {}]
  %s1 = inlined_call_operand.vmem [shape: f32[1,128], index: 1, kind: input, shape index: {}]
  %s2 = inlined_call_operand.vmem [shape: f32[1,128], index: 2, kind: input, shape index: {}]
  %s3 = inlined_call_operand.vmem [shape: bf16[512,128], index: 3, kind: output, shape index: {}]
  %s4 = sld [smem:[#allocation0]]
  $region45: #{residual_block.5} parent=0
    _
  %s6 = ssub.s32 1, %s4
  %s7 = scalar_select 0, %s6, %s4
  loop: start=0, step=1, limit=4
  $region2: #{residual_block.5} parent=0 // loop_pre_header
    _
  $region3: #{residual_block.5} parent=0 // loop_header
    %s9 = sphi 0, %s13
    %p10 = scmp.ge.s32.totalorder %s9, 4
    %s19 = sphi 0, %s21
    %s22 = sphi 0, %s19
    %s23 = sphi 0, %s22
    %s39 = sphi 0, %s23
    %s43 = sphi 0, %s43
    %s45 = sphi 0, %s43
    %s46 = sphi 0, %s45
    %s60 = sphi 0, %s46
    %s64 = sphi 0, %s64
    %s66 = sphi 0, %s64
    %s67 = sphi 0, %s66
    %s81 = sphi 0, %s67
    %s87 = sphi 0, %s89
    %s90 = sphi 0, %s87
    %s91 = sphi 0, %s90
    %s107 = sphi 0, %s91
  $region4: #{residual_block.5} parent=0 // loop_header_branch
    %12 = sbr.rel (%p10) target = $region8
  $region5: #{residual_block.5} parent=0 // loop_body
    %s14 = ssub.s32 %s9, 1
    %s15 = ssub.s32 %s9, 2
    %s16 = sadd.s32 %s9, 1
    %s17 = ssub.s32 %s9, %s16
    %p18 = scmp.eq.s32.totalorder %s17, 0
    %s20 = sadd.s32 %s19, 1
    %s21 = scalar_select %p18, %s19, %s20
    %p24 = pneg %p18
    %p25 = scmp.eq.s32.totalorder %s9, 1
    %p26 = por %p24, %p25
    %p27 = scmp.ne.s32.totalorder %s19, %s22
    %p28 = scmp.eq.s32.totalorder %s9, 0
    %p29 = por %p27, %p28
    %p30 = scmp.ne.s32.totalorder %s19, %s22
    %p31 = scmp.eq.s32.totalorder %s14, 1
    %p32 = por %p30, %p31
    %p33 = scmp.ne.s32.totalorder %s22, %s23
    %p34 = scmp.eq.s32.totalorder %s14, 0
    %p35 = por %p33, %p34
    %p36 = scmp.ne.s32.totalorder %s22, %s23
    %p37 = scmp.eq.s32.totalorder %s15, 1
    %p38 = por %p36, %p37
    %p40 = scmp.ne.s32.totalorder %s23, %s39
    %p41 = scmp.eq.s32.totalorder %s15, 0
    %p42 = por %p40, %p41
    %s44 = sadd.s32 %s43, 1
    %p47 = scmp.eq.s32.totalorder %s9, 1
    %p48 = scmp.ne.s32.totalorder %s43, %s45
    %p49 = scmp.eq.s32.totalorder %s9, 0
    %p50 = por %p48, %p49
    %p51 = scmp.ne.s32.totalorder %s43, %s45
    %p52 = scmp.eq.s32.totalorder %s14, 1
    %p53 = por %p51, %p52
    %p54 = scmp.ne.s32.totalorder %s45, %s46
    %p55 = scmp.eq.s32.totalorder %s14, 0
    %p56 = por %p54, %p55
    %p57 = scmp.ne.s32.totalorder %s45, %s46
    %p58 = scmp.eq.s32.totalorder %s15, 1
    %p59 = por %p57, %p58
    %p61 = scmp.ne.s32.totalorder %s46, %s60
    %p62 = scmp.eq.s32.totalorder %s15, 0
    %p63 = por %p61, %p62
    %s65 = sadd.s32 %s64, 1
    %p68 = scmp.eq.s32.totalorder %s9, 1
    %p69 = scmp.ne.s32.totalorder %s64, %s66
    %p70 = scmp.eq.s32.totalorder %s9, 0
    %p71 = por %p69, %p70
    %p72 = scmp.ne.s32.totalorder %s64, %s66
    %p73 = scmp.eq.s32.totalorder %s14, 1
    %p74 = por %p72, %p73
    %p75 = scmp.ne.s32.totalorder %s66, %s67
    %p76 = scmp.eq.s32.totalorder %s14, 0
    %p77 = por %p75, %p76
    %p78 = scmp.ne.s32.totalorder %s66, %s67
    %p79 = scmp.eq.s32.totalorder %s15, 1
    %p80 = por %p78, %p79
    %p82 = scmp.ne.s32.totalorder %s67, %s81
    %p83 = scmp.eq.s32.totalorder %s15, 0
    %p84 = por %p82, %p83
    %s85 = ssub.s32 %s9, %s16
    %p86 = scmp.eq.s32.totalorder %s85, 0
    %s88 = sadd.s32 %s87, 1
    %s89 = scalar_select %p86, %s87, %s88
    %p92 = pneg %p86
    %p93 = scmp.eq.s32.totalorder %s9, 1
    %p94 = por %p92, %p93
    %p95 = scmp.ne.s32.totalorder %s87, %s90
    %p96 = scmp.eq.s32.totalorder %s9, 0
    %p97 = por %p95, %p96
    %p98 = scmp.ne.s32.totalorder %s87, %s90
    %p99 = scmp.eq.s32.totalorder %s14, 1
    %p100 = por %p98, %p99
    %p101 = scmp.ne.s32.totalorder %s90, %s91
    %p102 = scmp.eq.s32.totalorder %s14, 0
    %p103 = por %p101, %p102
    %p104 = scmp.ne.s32.totalorder %s90, %s91
    %p105 = scmp.eq.s32.totalorder %s15, 1
    %p106 = por %p104, %p105
    %p108 = scmp.ne.s32.totalorder %s91, %s107
    %p109 = scmp.eq.s32.totalorder %s15, 0
    %p110 = por %p108, %p109
    %p111 = scmp.le.s32.totalorder 1, %s9
    %p112 = scmp.lt.s32.totalorder %s9, 3
    %p113 = pnand %p111, %p112
    %p114 = pneg %p113
    // Predicated region
    $region9: #{residual_block.5} parent=5 // pred_check
      _
    $region10: #{residual_block.5} parent=5 // pred_check_branch
      %116 = sbr.rel (%p113) target = $region12
    $region11: #{residual_block.5} parent=5 // pred_region
      %s117 = ssub.s32 %s9, 1
      // Predicated region
      $region13: #{residual_block.5} parent=11 // pred_check
        %p118 = pneg %p56
      $region14: #{residual_block.5} parent=11 // pred_check_branch
        %120 = sbr.rel (%p118) target = $region16
      $region15: #{residual_block.5} parent=11 // pred_region
        _
      $region16: #{residual_block.5} parent=11 // pred_fallthru
        _
      // Predicated region
      $region17: #{residual_block.5} parent=11 // pred_check
        %p121 = pneg %p77
      $region18: #{residual_block.5} parent=11 // pred_check_branch
        %123 = sbr.rel (%p121) target = $region20
      $region19: #{residual_block.5} parent=11 // pred_region
        _
      $region20: #{residual_block.5} parent=11 // pred_fallthru
        _
    $region12: #{residual_block.5} parent=5 // pred_fallthru
      _
    %p124 = scmp.lt.s32.totalorder %s9, 2
    // Predicated region
    $region21: #{residual_block.5} parent=5 // pred_check
      %p125 = pneg %p124
    $region22: #{residual_block.5} parent=5 // pred_check_branch
      %127 = sbr.rel (%p125) target = $region24
    $region23: #{residual_block.5} parent=5 // pred_region
      // Predicated region
      $region25: #{residual_block.5} parent=23 // pred_check
        %p128 = pneg %p29
      $region26: #{residual_block.5} parent=23 // pred_check_branch
        %130 = sbr.rel (%p128) target = $region28
      $region27: #{residual_block.5} parent=23 // pred_region
        %s131 = smul.u32 32, %s9
        %p132 = scmp.lt.s32.totalorder %s131, 63
        %s133 = scalar_select %p132, %s131, 63
        %s134 = smul.addr %s133, 8
        %s135 = scalar_lea.vmem %s0, %s134
        %s136 = smul.u32 32, %s9
      $region28: #{residual_block.5} parent=23 // pred_fallthru
        _
    $region24: #{residual_block.5} parent=5 // pred_fallthru
      _
    %p137 = scmp.le.s32.totalorder 1, %s9
    %p138 = scmp.lt.s32.totalorder %s9, 3
    %p139 = pnand %p137, %p138
    %p140 = pneg %p139
    // Predicated region
    $region29: #{residual_block.5} parent=5 // pred_check
      _
    $region30: #{residual_block.5} parent=5 // pred_check_branch
      %142 = sbr.rel (%p139) target = $region32
    $region31: #{residual_block.5} parent=5 // pred_region
      %s143 = ssub.s32 %s9, 1
      %s144 = smul.u32 32, %s14
      %p145 = scmp.lt.s32.totalorder %s144, 63
      %s146 = scalar_select %p145, %s144, 63
      %s147 = smul.addr %s146, 8
      %s148 = scalar_lea.vmem %s0, %s147
      %p149 = pneg %p35
      %p150 = pneg %p32
      %p151 = pneg %p56
      %p152 = pneg %p53
      %p153 = pneg %p77
      %p154 = pneg %p74
      %p155 = pneg %p103
      %p156 = pneg %p100
      %s157 = smul.u32 32, %s14
      %p158 = scmp.lt.s32.totalorder %s157, 63
      %s159 = scalar_select %p158, %s157, 63
      %s160 = smul.addr %s159, 4
      %s161 = scalar_lea.vmem %s3, %s160
      %s162 = smul.u32 32, %s14
      %p163 = scmp.lt.s32.totalorder %s162, 63
      %s164 = scalar_select %p163, %s162, 63
      %s165 = smul.addr %s164, 8
      %s166 = scalar_lea.vmem %s0, %s165
      %s167 = smul.u32 32, %s14
      %s168 = smul.u32 32, %s14
      %p169 = scmp.lt.s32.totalorder %s168, 63
      %s170 = scalar_select %p169, %s168, 63
      %s171 = smul.addr %s170, 4
      %s172 = scalar_lea.vmem %s3, %s171
      %s173 = smul.u32 32, %s14
      %v174 = vld [vmem:[%s166] sm:$0xff]
      %v175 = vld [vmem:[%s166 + $0x8] sm:$0xff]
      %v176 = vld [vmem:[%s166 + $0x10] sm:$0xff]
      %v177 = vld [vmem:[%s166 + $0x18] sm:$0xff]
      %v178 = vld [vmem:[%s166 + $0x20] sm:$0xff]
      %v179 = vld [vmem:[%s166 + $0x28] sm:$0xff]
      %v180 = vld [vmem:[%s166 + $0x30] sm:$0xff]
      %v181 = vld [vmem:[%s166 + $0x38] sm:$0xff]
      %v182 = vld [vmem:[%s166 + $0x40] sm:$0xff]
      %v183 = vld [vmem:[%s166 + $0x48] sm:$0xff]
      %v184 = vld [vmem:[%s166 + $0x50] sm:$0xff]
      %v185 = vld [vmem:[%s166 + $0x58] sm:$0xff]
      %v186 = vld [vmem:[%s166 + $0x60] sm:$0xff]
      %v187 = vld [vmem:[%s166 + $0x68] sm:$0xff]
      %v188 = vld [vmem:[%s166 + $0x70] sm:$0xff]
      %v189 = vld [vmem:[%s166 + $0x78] sm:$0xff]
      %v190 = vld [vmem:[%s166 + $0x80] sm:$0xff]
      %v191 = vld [vmem:[%s166 + $0x88] sm:$0xff]
      %v192 = vld [vmem:[%s166 + $0x90] sm:$0xff]
      %v193 = vld [vmem:[%s166 + $0x98] sm:$0xff]
      %v194 = vld [vmem:[%s166 + $0xa0] sm:$0xff]
      %v195 = vld [vmem:[%s166 + $0xa8] sm:$0xff]
      %v196 = vld [vmem:[%s166 + $0xb0] sm:$0xff]
      %v197 = vld [vmem:[%s166 + $0xb8] sm:$0xff]
      %v198 = vld [vmem:[%s166 + $0xc0] sm:$0xff]
      %v199 = vld [vmem:[%s166 + $0xc8] sm:$0xff]
      %v200 = vld [vmem:[%s166 + $0xd0] sm:$0xff]
      %v201 = vld [vmem:[%s166 + $0xd8] sm:$0xff]
      %v202 = vld [vmem:[%s166 + $0xe0] sm:$0xff]
      %v203 = vld [vmem:[%s166 + $0xe8] sm:$0xff]
      %v204 = vld [vmem:[%s166 + $0xf0] sm:$0xff]
      %v205 = vld [vmem:[%s166 + $0xf8] sm:$0xff]
      %v206 = vld [vmem:[%s1] sm:$0x1]
      %v208 = vperm.slane %v206, 0
      %v210 = vmul.f32 %v174, %v208
      %v211 = vmul.f32 %v175, %v208
      %v212 = vmul.f32 %v176, %v208
      %v213 = vmul.f32 %v177, %v208
      %v214 = vmul.f32 %v178, %v208
      %v215 = vmul.f32 %v179, %v208
      %v216 = vmul.f32 %v180, %v208
      %v217 = vmul.f32 %v181, %v208
      %v218 = vmul.f32 %v182, %v208
      %v219 = vmul.f32 %v183, %v208
      %v220 = vmul.f32 %v184, %v208
      %v221 = vmul.f32 %v185, %v208
      %v222 = vmul.f32 %v186, %v208
      %v223 = vmul.f32 %v187, %v208
      %v224 = vmul.f32 %v188, %v208
      %v225 = vmul.f32 %v189, %v208
      %v226 = vmul.f32 %v190, %v208
      %v227 = vmul.f32 %v191, %v208
      %v228 = vmul.f32 %v192, %v208
      %v229 = vmul.f32 %v193, %v208
      %v230 = vmul.f32 %v194, %v208
      %v231 = vmul.f32 %v195, %v208
      %v232 = vmul.f32 %v196, %v208
      %v233 = vmul.f32 %v197, %v208
      %v234 = vmul.f32 %v198, %v208
      %v235 = vmul.f32 %v199, %v208
      %v236 = vmul.f32 %v200, %v208
      %v237 = vmul.f32 %v201, %v208
      %v238 = vmul.f32 %v202, %v208
      %v239 = vmul.f32 %v203, %v208
      %v240 = vmul.f32 %v204, %v208
      %v241 = vmul.f32 %v205, %v208
      %v242 = vld [vmem:[%s2] sm:$0x1]
      %v244 = vperm.slane %v242, 0
      %v246 = vadd.f32 %v210, %v244
      %v247 = vadd.f32 %v211, %v244
      %v248 = vadd.f32 %v212, %v244
      %v249 = vadd.f32 %v213, %v244
      %v250 = vadd.f32 %v214, %v244
      %v251 = vadd.f32 %v215, %v244
      %v252 = vadd.f32 %v216, %v244
      %v253 = vadd.f32 %v217, %v244
      %v254 = vadd.f32 %v218, %v244
      %v255 = vadd.f32 %v219, %v244
      %v256 = vadd.f32 %v220, %v244
      %v257 = vadd.f32 %v221, %v244
      %v258 = vadd.f32 %v222, %v244
      %v259 = vadd.f32 %v223, %v244
      %v260 = vadd.f32 %v224, %v244
      %v261 = vadd.f32 %v225, %v244
      %v262 = vadd.f32 %v226, %v244
      %v263 = vadd.f32 %v227, %v244
      %v264 = vadd.f32 %v228, %v244
      %v265 = vadd.f32 %v229, %v244
      %v266 = vadd.f32 %v230, %v244
      %v267 = vadd.f32 %v231, %v244
      %v268 = vadd.f32 %v232, %v244
      %v269 = vadd.f32 %v233, %v244
      %v270 = vadd.f32 %v234, %v244
      %v271 = vadd.f32 %v235, %v244
      %v272 = vadd.f32 %v236, %v244
      %v273 = vadd.f32 %v237, %v244
      %v274 = vadd.f32 %v238, %v244
      %v275 = vadd.f32 %v239, %v244
      %v276 = vadd.f32 %v240, %v244
      %v277 = vadd.f32 %v241, %v244
      %v278 = vmax.f32 %v246, 0.0
      %v279 = vmax.f32 %v247, 0.0
      %v280 = vmax.f32 %v248, 0.0
      %v281 = vmax.f32 %v249, 0.0
      %v282 = vmax.f32 %v250, 0.0
      %v283 = vmax.f32 %v251, 0.0
      %v284 = vmax.f32 %v252, 0.0
      %v285 = vmax.f32 %v253, 0.0
      %v286 = vmax.f32 %v254, 0.0
      %v287 = vmax.f32 %v255, 0.0
      %v288 = vmax.f32 %v256, 0.0
      %v289 = vmax.f32 %v257, 0.0
      %v290 = vmax.f32 %v258, 0.0
      %v291 = vmax.f32 %v259, 0.0
      %v292 = vmax.f32 %v260, 0.0
      %v293 = vmax.f32 %v261, 0.0
      %v294 = vmax.f32 %v262, 0.0
      %v295 = vmax.f32 %v263, 0.0
      %v296 = vmax.f32 %v264, 0.0
      %v297 = vmax.f32 %v265, 0.0
      %v298 = vmax.f32 %v266, 0.0
      %v299 = vmax.f32 %v267, 0.0
      %v300 = vmax.f32 %v268, 0.0
      %v301 = vmax.f32 %v269, 0.0
      %v302 = vmax.f32 %v270, 0.0
      %v303 = vmax.f32 %v271, 0.0
      %v304 = vmax.f32 %v272, 0.0
      %v305 = vmax.f32 %v273, 0.0
      %v306 = vmax.f32 %v274, 0.0
      %v307 = vmax.f32 %v275, 0.0
      %v308 = vmax.f32 %v276, 0.0
      %v309 = vmax.f32 %v277, 0.0
      %v310 = vpack.c.bf16 %v278, %v278
      %v311 = vpack.c.bf16 %v279, %v279
      %v312 = vpack.c.bf16 %v280, %v280
      %v313 = vpack.c.bf16 %v281, %v281
      %v314 = vpack.c.bf16 %v282, %v282
      %v315 = vpack.c.bf16 %v283, %v283
      %v316 = vpack.c.bf16 %v284, %v284
      %v317 = vpack.c.bf16 %v285, %v285
      %v318 = vpack.c.bf16 %v286, %v286
      %v319 = vpack.c.bf16 %v287, %v287
      %v320 = vpack.c.bf16 %v288, %v288
      %v321 = vpack.c.bf16 %v289, %v289
      %v322 = vpack.c.bf16 %v290, %v290
      %v323 = vpack.c.bf16 %v291, %v291
      %v324 = vpack.c.bf16 %v292, %v292
      %v325 = vpack.c.bf16 %v293, %v293
      %v326 = vpack.c.bf16 %v294, %v294
      %v327 = vpack.c.bf16 %v295, %v295
      %v328 = vpack.c.bf16 %v296, %v296
      %v329 = vpack.c.bf16 %v297, %v297
      %v330 = vpack.c.bf16 %v298, %v298
      %v331 = vpack.c.bf16 %v299, %v299
      %v332 = vpack.c.bf16 %v300, %v300
      %v333 = vpack.c.bf16 %v301, %v301
      %v334 = vpack.c.bf16 %v302, %v302
      %v335 = vpack.c.bf16 %v303, %v303
      %v336 = vpack.c.bf16 %v304, %v304
      %v337 = vpack.c.bf16 %v305, %v305
      %v338 = vpack.c.bf16 %v306, %v306
      %v339 = vpack.c.bf16 %v307, %v307
      %v340 = vpack.c.bf16 %v308, %v308
      %v341 = vpack.c.bf16 %v309, %v309
      %342 = vst [vmem:[%s172] sm:$0xf] %v310
      %343 = vst [vmem:[%s172 + $0x4] sm:$0xf] %v311
      %344 = vst [vmem:[%s172 + $0x8] sm:$0xf] %v312
      %345 = vst [vmem:[%s172 + $0xc] sm:$0xf] %v313
      %346 = vst [vmem:[%s172 + $0x10] sm:$0xf] %v314
      %347 = vst [vmem:[%s172 + $0x14] sm:$0xf] %v315
      %348 = vst [vmem:[%s172 + $0x18] sm:$0xf] %v316
      %349 = vst [vmem:[%s172 + $0x1c] sm:$0xf] %v317
      %350 = vst [vmem:[%s172 + $0x20] sm:$0xf] %v318
      %351 = vst [vmem:[%s172 + $0x24] sm:$0xf] %v319
      %352 = vst [vmem:[%s172 + $0x28] sm:$0xf] %v320
      %353 = vst [vmem:[%s172 + $0x2c] sm:$0xf] %v321
      %354 = vst [vmem:[%s172 + $0x30] sm:$0xf] %v322
      %355 = vst [vmem:[%s172 + $0x34] sm:$0xf] %v323
      %356 = vst [vmem:[%s172 + $0x38] sm:$0xf] %v324
      %357 = vst [vmem:[%s172 + $0x3c] sm:$0xf] %v325
      %358 = vst [vmem:[%s172 + $0x40] sm:$0xf] %v326
      %359 = vst [vmem:[%s172 + $0x44] sm:$0xf] %v327
      %360 = vst [vmem:[%s172 + $0x48] sm:$0xf] %v328
      %361 = vst [vmem:[%s172 + $0x4c] sm:$0xf] %v329
      %362 = vst [vmem:[%s172 + $0x50] sm:$0xf] %v330
      %363 = vst [vmem:[%s172 + $0x54] sm:$0xf] %v331
      %364 = vst [vmem:[%s172 + $0x58] sm:$0xf] %v332
      %365 = vst [vmem:[%s172 + $0x5c] sm:$0xf] %v333
      %366 = vst [vmem:[%s172 + $0x60] sm:$0xf] %v334
      %367 = vst [vmem:[%s172 + $0x64] sm:$0xf] %v335
      %368 = vst [vmem:[%s172 + $0x68] sm:$0xf] %v336
      %369 = vst [vmem:[%s172 + $0x6c] sm:$0xf] %v337
      %370 = vst [vmem:[%s172 + $0x70] sm:$0xf] %v338
      %371 = vst [vmem:[%s172 + $0x74] sm:$0xf] %v339
      %372 = vst [vmem:[%s172 + $0x78] sm:$0xf] %v340
      %373 = vst [vmem:[%s172 + $0x7c] sm:$0xf] %v341
      %s374 = smul.u32 32, %s14
      %p375 = scmp.lt.s32.totalorder %s374, 63
      %s376 = scalar_select %p375, %s374, 63
      %s377 = smul.addr %s376, 4
      %s378 = scalar_lea.vmem %s3, %s377
      // Predicated region
      $region33: #{residual_block.5} parent=31 // pred_check
        %p379 = pneg %p100
      $region34: #{residual_block.5} parent=31 // pred_check_branch
        %381 = sbr.rel (%p379) target = $region36
      $region35: #{residual_block.5} parent=31 // pred_region
        %s382 = smul.u32 32, %s14
      $region36: #{residual_block.5} parent=31 // pred_fallthru
        _
    $region32: #{residual_block.5} parent=5 // pred_fallthru
      _
    %p383 = scmp.le.s32.totalorder 2, %s9
    // Predicated region
    $region37: #{residual_block.5} parent=5 // pred_check
      %p384 = pneg %p383
    $region38: #{residual_block.5} parent=5 // pred_check_branch
      %386 = sbr.rel (%p384) target = $region40
    $region39: #{residual_block.5} parent=5 // pred_region
      %s387 = ssub.s32 %s9, 2
      // Predicated region
      $region41: #{residual_block.5} parent=39 // pred_check
        %p388 = pneg %p106
      $region42: #{residual_block.5} parent=39 // pred_check_branch
        %390 = sbr.rel (%p388) target = $region44
      $region43: #{residual_block.5} parent=39 // pred_region
        %s391 = smul.u32 32, %s15
        %p392 = scmp.lt.s32.totalorder %s391, 63
        %s393 = scalar_select %p392, %s391, 63
        %s394 = smul.addr %s393, 4
        %s395 = scalar_lea.vmem %s3, %s394
      $region44: #{residual_block.5} parent=39 // pred_fallthru
        _
    $region40: #{residual_block.5} parent=5 // pred_fallthru
      _
  $region6: #{residual_block.5} parent=0 // loop_footer
    %s13 = sadd.s32 1, %s9
  $region7: #{residual_block.5} parent=0 // loop_footer_branch
    %8 = sbr.rel target = $region3
  $region8: #{residual_block.5} parent=0 // loop_exit
    _

// kernel: residual_block.7
$region0: #{residual_block.7}
  #allocation0 [shape = 'u32[]', space=smem, size = 0x4, offset = 0x4, fixed_abs, tag = 'smem constant byte address 0x4 - core index']
  #allocation1 [shape = 'u32[72,128]{1,0:T(1,128)}', space=vmem, size = 0x9000, scoped, tag = 'internal scratch']
  %s0 = inlined_call_operand.vmem [shape: f32[512,128], index: 0, kind: input, shape index: {}]
  %s1 = inlined_call_operand.vmem [shape: f32[1,128], index: 1, kind: input, shape index: {}]
  %s2 = inlined_call_operand.vmem [shape: f32[1,128], index: 2, kind: input, shape index: {}]
  %s3 = inlined_call_operand.vmem [shape: f32[512,128], index: 3, kind: input, shape index: {}]
  %s4 = inlined_call_operand.vmem [shape: f32[512,128], index: 4, kind: output, shape index: {}]
  %s5 = sld [smem:[#allocation0]]
  $region49: #{residual_block.7} parent=0
    _
  %s7 = ssub.s32 1, %s5
  %s8 = scalar_select 0, %s7, %s5
  loop: start=0, step=1, limit=4
  $region2: #{residual_block.7} parent=0 // loop_pre_header
    _
  $region3: #{residual_block.7} parent=0 // loop_header
    %s10 = sphi 0, %s14
    %p11 = scmp.ge.s32.totalorder %s10, 4
    %s20 = sphi 0, %s22
    %s23 = sphi 0, %s20
    %s24 = sphi 0, %s23
    %s40 = sphi 0, %s24
    %s44 = sphi 0, %s44
    %s46 = sphi 0, %s44
    %s47 = sphi 0, %s46
    %s61 = sphi 0, %s47
    %s65 = sphi 0, %s65
    %s67 = sphi 0, %s65
    %s68 = sphi 0, %s67
    %s82 = sphi 0, %s68
    %s88 = sphi 0, %s90
    %s91 = sphi 0, %s88
    %s92 = sphi 0, %s91
    %s108 = sphi 0, %s92
    %s114 = sphi 0, %s116
    %s117 = sphi 0, %s114
    %s118 = sphi 0, %s117
    %s134 = sphi 0, %s118
  $region4: #{residual_block.7} parent=0 // loop_header_branch
    %13 = sbr.rel (%p11) target = $region8
  $region5: #{residual_block.7} parent=0 // loop_body
    %s15 = ssub.s32 %s10, 1
    %s16 = ssub.s32 %s10, 2
    %s17 = sadd.s32 %s10, 1
    %s18 = ssub.s32 %s10, %s17
    %p19 = scmp.eq.s32.totalorder %s18, 0
    %s21 = sadd.s32 %s20, 1
    %s22 = scalar_select %p19, %s20, %s21
    %p25 = pneg %p19
    %p26 = scmp.eq.s32.totalorder %s10, 1
    %p27 = por %p25, %p26
    %p28 = scmp.ne.s32.totalorder %s20, %s23
    %p29 = scmp.eq.s32.totalorder %s10, 0
    %p30 = por %p28, %p29
    %p31 = scmp.ne.s32.totalorder %s20, %s23
    %p32 = scmp.eq.s32.totalorder %s15, 1
    %p33 = por %p31, %p32
    %p34 = scmp.ne.s32.totalorder %s23, %s24
    %p35 = scmp.eq.s32.totalorder %s15, 0
    %p36 = por %p34, %p35
    %p37 = scmp.ne.s32.totalorder %s23, %s24
    %p38 = scmp.eq.s32.totalorder %s16, 1
    %p39 = por %p37, %p38
    %p41 = scmp.ne.s32.totalorder %s24, %s40
    %p42 = scmp.eq.s32.totalorder %s16, 0
    %p43 = por %p41, %p42
    %s45 = sadd.s32 %s44, 1
    %p48 = scmp.eq.s32.totalorder %s10, 1
    %p49 = scmp.ne.s32.totalorder %s44, %s46
    %p50 = scmp.eq.s32.totalorder %s10, 0
    %p51 = por %p49, %p50
    %p52 = scmp.ne.s32.totalorder %s44, %s46
    %p53 = scmp.eq.s32.totalorder %s15, 1
    %p54 = por %p52, %p53
    %p55 = scmp.ne.s32.totalorder %s46, %s47
    %p56 = scmp.eq.s32.totalorder %s15, 0
    %p57 = por %p55, %p56
    %p58 = scmp.ne.s32.totalorder %s46, %s47
    %p59 = scmp.eq.s32.totalorder %s16, 1
    %p60 = por %p58, %p59
    %p62 = scmp.ne.s32.totalorder %s47, %s61
    %p63 = scmp.eq.s32.totalorder %s16, 0
    %p64 = por %p62, %p63
    %s66 = sadd.s32 %s65, 1
    %p69 = scmp.eq.s32.totalorder %s10, 1
    %p70 = scmp.ne.s32.totalorder %s65, %s67
    %p71 = scmp.eq.s32.totalorder %s10, 0
    %p72 = por %p70, %p71
    %p73 = scmp.ne.s32.totalorder %s65, %s67
    %p74 = scmp.eq.s32.totalorder %s15, 1
    %p75 = por %p73, %p74
    %p76 = scmp.ne.s32.totalorder %s67, %s68
    %p77 = scmp.eq.s32.totalorder %s15, 0
    %p78 = por %p76, %p77
    %p79 = scmp.ne.s32.totalorder %s67, %s68
    %p80 = scmp.eq.s32.totalorder %s16, 1
    %p81 = por %p79, %p80
    %p83 = scmp.ne.s32.totalorder %s68, %s82
    %p84 = scmp.eq.s32.totalorder %s16, 0
    %p85 = por %p83, %p84
    %s86 = ssub.s32 %s10, %s17
    %p87 = scmp.eq.s32.totalorder %s86, 0
    %s89 = sadd.s32 %s88, 1
    %s90 = scalar_select %p87, %s88, %s89
    %p93 = pneg %p87
    %p94 = scmp.eq.s32.totalorder %s10, 1
    %p95 = por %p93, %p94
    %p96 = scmp.ne.s32.totalorder %s88, %s91
    %p97 = scmp.eq.s32.totalorder %s10, 0
    %p98 = por %p96, %p97
    %p99 = scmp.ne.s32.totalorder %s88, %s91
    %p100 = scmp.eq.s32.totalorder %s15, 1
    %p101 = por %p99, %p100
    %p102 = scmp.ne.s32.totalorder %s91, %s92
    %p103 = scmp.eq.s32.totalorder %s15, 0
    %p104 = por %p102, %p103
    %p105 = scmp.ne.s32.totalorder %s91, %s92
    %p106 = scmp.eq.s32.totalorder %s16, 1
    %p107 = por %p105, %p106
    %p109 = scmp.ne.s32.totalorder %s92, %s108
    %p110 = scmp.eq.s32.totalorder %s16, 0
    %p111 = por %p109, %p110
    %s112 = ssub.s32 %s10, %s17
    %p113 = scmp.eq.s32.totalorder %s112, 0
    %s115 = sadd.s32 %s114, 1
    %s116 = scalar_select %p113, %s114, %s115
    %p119 = pneg %p113
    %p120 = scmp.eq.s32.totalorder %s10, 1
    %p121 = por %p119, %p120
    %p122 = scmp.ne.s32.totalorder %s114, %s117
    %p123 = scmp.eq.s32.totalorder %s10, 0
    %p124 = por %p122, %p123
    %p125 = scmp.ne.s32.totalorder %s114, %s117
    %p126 = scmp.eq.s32.totalorder %s15, 1
    %p127 = por %p125, %p126
    %p128 = scmp.ne.s32.totalorder %s117, %s118
    %p129 = scmp.eq.s32.totalorder %s15, 0
    %p130 = por %p128, %p129
    %p131 = scmp.ne.s32.totalorder %s117, %s118
    %p132 = scmp.eq.s32.totalorder %s16, 1
    %p133 = por %p131, %p132
    %p135 = scmp.ne.s32.totalorder %s118, %s134
    %p136 = scmp.eq.s32.totalorder %s16, 0
    %p137 = por %p135, %p136
    %p138 = scmp.le.s32.totalorder 1, %s10
    %p139 = scmp.lt.s32.totalorder %s10, 3
    %p140 = pnand %p138, %p139
    %p141 = pneg %p140
    // Predicated region
    $region9: #{residual_block.7} parent=5 // pred_check
      _
    $region10: #{residual_block.7} parent=5 // pred_check_branch
      %143 = sbr.rel (%p140) target = $region12
    $region11: #{residual_block.7} parent=5 // pred_region
      %s144 = ssub.s32 %s10, 1
      // Predicated region
      $region13: #{residual_block.7} parent=11 // pred_check
        %p145 = pneg %p57
      $region14: #{residual_block.7} parent=11 // pred_check_branch
        %147 = sbr.rel (%p145) target = $region16
      $region15: #{residual_block.7} parent=11 // pred_region
        _
      $region16: #{residual_block.7} parent=11 // pred_fallthru
        _
      // Predicated region
      $region17: #{residual_block.7} parent=11 // pred_check
        %p148 = pneg %p78
      $region18: #{residual_block.7} parent=11 // pred_check_branch
        %150 = sbr.rel (%p148) target = $region20
      $region19: #{residual_block.7} parent=11 // pred_region
        _
      $region20: #{residual_block.7} parent=11 // pred_fallthru
        _
    $region12: #{residual_block.7} parent=5 // pred_fallthru
      _
    %p151 = scmp.lt.s32.totalorder %s10, 2
    // Predicated region
    $region21: #{residual_block.7} parent=5 // pred_check
      %p152 = pneg %p151
    $region22: #{residual_block.7} parent=5 // pred_check_branch
      %154 = sbr.rel (%p152) target = $region24
    $region23: #{residual_block.7} parent=5 // pred_region
      // Predicated region
      $region25: #{residual_block.7} parent=23 // pred_check
        %p155 = pneg %p30
      $region26: #{residual_block.7} parent=23 // pred_check_branch
        %157 = sbr.rel (%p155) target = $region28
      $region27: #{residual_block.7} parent=23 // pred_region
        %s158 = smul.u32 32, %s10
        %p159 = scmp.lt.s32.totalorder %s158, 63
        %s160 = scalar_select %p159, %s158, 63
        %s161 = smul.addr %s160, 8
        %s162 = scalar_lea.vmem %s0, %s161
        %s163 = smul.u32 32, %s10
      $region28: #{residual_block.7} parent=23 // pred_fallthru
        _
      // Predicated region
      $region29: #{residual_block.7} parent=23 // pred_check
        %p164 = pneg %p98
      $region30: #{residual_block.7} parent=23 // pred_check_branch
        %166 = sbr.rel (%p164) target = $region32
      $region31: #{residual_block.7} parent=23 // pred_region
        %s167 = smul.u32 32, %s10
        %p168 = scmp.lt.s32.totalorder %s167, 63
        %s169 = scalar_select %p168, %s167, 63
        %s170 = smul.addr %s169, 8
        %s171 = scalar_lea.vmem %s3, %s170
        %s172 = smul.u32 32, %s10
      $region32: #{residual_block.7} parent=23 // pred_fallthru
        _
    $region24: #{residual_block.7} parent=5 // pred_fallthru
      _
    %p173 = scmp.le.s32.totalorder 1, %s10
    %p174 = scmp.lt.s32.totalorder %s10, 3
    %p175 = pnand %p173, %p174
    %p176 = pneg %p175
    // Predicated region
    $region33: #{residual_block.7} parent=5 // pred_check
      _
    $region34: #{residual_block.7} parent=5 // pred_check_branch
      %178 = sbr.rel (%p175) target = $region36
    $region35: #{residual_block.7} parent=5 // pred_region
      %s179 = ssub.s32 %s10, 1
      %s180 = smul.u32 32, %s15
      %p181 = scmp.lt.s32.totalorder %s180, 63
      %s182 = scalar_select %p181, %s180, 63
      %s183 = smul.addr %s182, 8
      %s184 = scalar_lea.vmem %s0, %s183
      %p185 = pneg %p36
      %p186 = pneg %p33
      %p187 = pneg %p57
      %p188 = pneg %p54
      %p189 = pneg %p78
      %p190 = pneg %p75
      %s191 = smul.u32 32, %s15
      %p192 = scmp.lt.s32.totalorder %s191, 63
      %s193 = scalar_select %p192, %s191, 63
      %s194 = smul.addr %s193, 8
      %s195 = scalar_lea.vmem %s3, %s194
      %p196 = pneg %p104
      %p197 = pneg %p101
      %p198 = pneg %p130
      %p199 = pneg %p127
      %s200 = smul.u32 32, %s15
      %p201 = scmp.lt.s32.totalorder %s200, 63
      %s202 = scalar_select %p201, %s200, 63
      %s203 = smul.addr %s202, 8
      %s204 = scalar_lea.vmem %s4, %s203
      %s205 = smul.u32 32, %s15
      %p206 = scmp.lt.s32.totalorder %s205, 63
      %s207 = scalar_select %p206, %s205, 63
      %s208 = smul.addr %s207, 8
      %s209 = scalar_lea.vmem %s0, %s208
      %s210 = smul.u32 32, %s15
      %s211 = smul.u32 32, %s15
      %p212 = scmp.lt.s32.totalorder %s211, 63
      %s213 = scalar_select %p212, %s211, 63
      %s214 = smul.addr %s213, 8
      %s215 = scalar_lea.vmem %s3, %s214
      %s216 = smul.u32 32, %s15
      %s217 = smul.u32 32, %s15
      %p218 = scmp.lt.s32.totalorder %s217, 63
      %s219 = scalar_select %p218, %s217, 63
      %s220 = smul.addr %s219, 8
      %s221 = scalar_lea.vmem %s4, %s220
      %s222 = smul.u32 32, %s15
      %v223 = vld [vmem:[%s209] sm:$0xff]
      %v224 = vld [vmem:[%s209 + $0x8] sm:$0xff]
      %v225 = vld [vmem:[%s209 + $0x10] sm:$0xff]
      %v226 = vld [vmem:[%s209 + $0x18] sm:$0xff]
      %v227 = vld [vmem:[%s209 + $0x20] sm:$0xff]
      %v228 = vld [vmem:[%s209 + $0x28] sm:$0xff]
      %v229 = vld [vmem:[%s209 + $0x30] sm:$0xff]
      %v230 = vld [vmem:[%s209 + $0x38] sm:$0xff]
      %v231 = vld [vmem:[%s209 + $0x40] sm:$0xff]
      %v232 = vld [vmem:[%s209 + $0x48] sm:$0xff]
      %v233 = vld [vmem:[%s209 + $0x50] sm:$0xff]
      %v234 = vld [vmem:[%s209 + $0x58] sm:$0xff]
      %v235 = vld [vmem:[%s209 + $0x60] sm:$0xff]
      %v236 = vld [vmem:[%s209 + $0x68] sm:$0xff]
      %v237 = vld [vmem:[%s209 + $0x70] sm:$0xff]
      %v238 = vld [vmem:[%s209 + $0x78] sm:$0xff]
      %v239 = vld [vmem:[%s209 + $0x80] sm:$0xff]
      %v240 = vld [vmem:[%s209 + $0x88] sm:$0xff]
      %v241 = vld [vmem:[%s209 + $0x90] sm:$0xff]
      %v242 = vld [vmem:[%s209 + $0x98] sm:$0xff]
      %v243 = vld [vmem:[%s209 + $0xa0] sm:$0xff]
      %v244 = vld [vmem:[%s209 + $0xa8] sm:$0xff]
      %v245 = vld [vmem:[%s209 + $0xb0] sm:$0xff]
      %v246 = vld [vmem:[%s209 + $0xb8] sm:$0xff]
      %v247 = vld [vmem:[%s209 + $0xc0] sm:$0xff]
      %v248 = vld [vmem:[%s209 + $0xc8] sm:$0xff]
      %v249 = vld [vmem:[%s209 + $0xd0] sm:$0xff]
      %v250 = vld [vmem:[%s209 + $0xd8] sm:$0xff]
      %v251 = vld [vmem:[%s209 + $0xe0] sm:$0xff]
      %v252 = vld [vmem:[%s209 + $0xe8] sm:$0xff]
      %v253 = vld [vmem:[%s209 + $0xf0] sm:$0xff]
      %v254 = vld [vmem:[%s209 + $0xf8] sm:$0xff]
      %v255 = vld [vmem:[%s1] sm:$0x1]
      %v257 = vperm.slane %v255, 0
      %v259 = vmul.f32 %v223, %v257
      %v260 = vmul.f32 %v224, %v257
      %v261 = vmul.f32 %v225, %v257
      %v262 = vmul.f32 %v226, %v257
      %v263 = vmul.f32 %v227, %v257
      %v264 = vmul.f32 %v228, %v257
      %v265 = vmul.f32 %v229, %v257
      %v266 = vmul.f32 %v230, %v257
      %v267 = vmul.f32 %v231, %v257
      %v268 = vmul.f32 %v232, %v257
      %v269 = vmul.f32 %v233, %v257
      %v270 = vmul.f32 %v234, %v257
      %v271 = vmul.f32 %v235, %v257
      %v272 = vmul.f32 %v236, %v257
      %v273 = vmul.f32 %v237, %v257
      %v274 = vmul.f32 %v238, %v257
      %v275 = vmul.f32 %v239, %v257
      %v276 = vmul.f32 %v240, %v257
      %v277 = vmul.f32 %v241, %v257
      %v278 = vmul.f32 %v242, %v257
      %v279 = vmul.f32 %v243, %v257
      %v280 = vmul.f32 %v244, %v257
      %v281 = vmul.f32 %v245, %v257
      %v282 = vmul.f32 %v246, %v257
      %v283 = vmul.f32 %v247, %v257
      %v284 = vmul.f32 %v248, %v257
      %v285 = vmul.f32 %v249, %v257
      %v286 = vmul.f32 %v250, %v257
      %v287 = vmul.f32 %v251, %v257
      %v288 = vmul.f32 %v252, %v257
      %v289 = vmul.f32 %v253, %v257
      %v290 = vmul.f32 %v254, %v257
      %v291 = vld [vmem:[%s2] sm:$0x1]
      %v293 = vperm.slane %v291, 0
      %v295 = vadd.f32 %v259, %v293
      %v296 = vadd.f32 %v260, %v293
      %v297 = vadd.f32 %v261, %v293
      %v298 = vadd.f32 %v262, %v293
      %v299 = vadd.f32 %v263, %v293
      %v300 = vadd.f32 %v264, %v293
      %v301 = vadd.f32 %v265, %v293
      %v302 = vadd.f32 %v266, %v293
      %v303 = vadd.f32 %v267, %v293
      %v304 = vadd.f32 %v268, %v293
      %v305 = vadd.f32 %v269, %v293
      %v306 = vadd.f32 %v270, %v293
      %v307 = vadd.f32 %v271, %v293
      %v308 = vadd.f32 %v272, %v293
      %v309 = vadd.f32 %v273, %v293
      %v310 = vadd.f32 %v274, %v293
      %v311 = vadd.f32 %v275, %v293
      %v312 = vadd.f32 %v276, %v293
      %v313 = vadd.f32 %v277, %v293
      %v314 = vadd.f32 %v278, %v293
      %v315 = vadd.f32 %v279, %v293
      %v316 = vadd.f32 %v280, %v293
      %v317 = vadd.f32 %v281, %v293
      %v318 = vadd.f32 %v282, %v293
      %v319 = vadd.f32 %v283, %v293
      %v320 = vadd.f32 %v284, %v293
      %v321 = vadd.f32 %v285, %v293
      %v322 = vadd.f32 %v286, %v293
      %v323 = vadd.f32 %v287, %v293
      %v324 = vadd.f32 %v288, %v293
      %v325 = vadd.f32 %v289, %v293
      %v326 = vadd.f32 %v290, %v293
      %v327 = vld [vmem:[%s215] sm:$0xff]
      %v328 = vld [vmem:[%s215 + $0x8] sm:$0xff]
      %v329 = vld [vmem:[%s215 + $0x10] sm:$0xff]
      %v330 = vld [vmem:[%s215 + $0x18] sm:$0xff]
      %v331 = vld [vmem:[%s215 + $0x20] sm:$0xff]
      %v332 = vld [vmem:[%s215 + $0x28] sm:$0xff]
      %v333 = vld [vmem:[%s215 + $0x30] sm:$0xff]
      %v334 = vld [vmem:[%s215 + $0x38] sm:$0xff]
      %v335 = vld [vmem:[%s215 + $0x40] sm:$0xff]
      %v336 = vld [vmem:[%s215 + $0x48] sm:$0xff]
      %v337 = vld [vmem:[%s215 + $0x50] sm:$0xff]
      %v338 = vld [vmem:[%s215 + $0x58] sm:$0xff]
      %v339 = vld [vmem:[%s215 + $0x60] sm:$0xff]
      %v340 = vld [vmem:[%s215 + $0x68] sm:$0xff]
      %v341 = vld [vmem:[%s215 + $0x70] sm:$0xff]
      %v342 = vld [vmem:[%s215 + $0x78] sm:$0xff]
      %v343 = vld [vmem:[%s215 + $0x80] sm:$0xff]
      %v344 = vld [vmem:[%s215 + $0x88] sm:$0xff]
      %v345 = vld [vmem:[%s215 + $0x90] sm:$0xff]
      %v346 = vld [vmem:[%s215 + $0x98] sm:$0xff]
      %v347 = vld [vmem:[%s215 + $0xa0] sm:$0xff]
      %v348 = vld [vmem:[%s215 + $0xa8] sm:$0xff]
      %v349 = vld [vmem:[%s215 + $0xb0] sm:$0xff]
      %v350 = vld [vmem:[%s215 + $0xb8] sm:$0xff]
      %v351 = vld [vmem:[%s215 + $0xc0] sm:$0xff]
      %v352 = vld [vmem:[%s215 + $0xc8] sm:$0xff]
      %v353 = vld [vmem:[%s215 + $0xd0] sm:$0xff]
      %v354 = vld [vmem:[%s215 + $0xd8] sm:$0xff]
      %v355 = vld [vmem:[%s215 + $0xe0] sm:$0xff]
      %v356 = vld [vmem:[%s215 + $0xe8] sm:$0xff]
      %v357 = vld [vmem:[%s215 + $0xf0] sm:$0xff]
      %v358 = vld [vmem:[%s215 + $0xf8] sm:$0xff]
      %v359 = vadd.f32 %v295, %v327
      %v360 = vadd.f32 %v296, %v328
      %v361 = vadd.f32 %v297, %v329
      %v362 = vadd.f32 %v298, %v330
      %v363 = vadd.f32 %v299, %v331
      %v364 = vadd.f32 %v300, %v332
      %v365 = vadd.f32 %v301, %v333
      %v366 = vadd.f32 %v302, %v334
      %v367 = vadd.f32 %v303, %v335
      %v368 = vadd.f32 %v304, %v336
      %v369 = vadd.f32 %v305, %v337
      %v370 = vadd.f32 %v306, %v338
      %v371 = vadd.f32 %v307, %v339
      %v372 = vadd.f32 %v308, %v340
      %v373 = vadd.f32 %v309, %v341
      %v374 = vadd.f32 %v310, %v342
      %v375 = vadd.f32 %v311, %v343
      %v376 = vadd.f32 %v312, %v344
      %v377 = vadd.f32 %v313, %v345
      %v378 = vadd.f32 %v314, %v346
      %v379 = vadd.f32 %v315, %v347
      %v380 = vadd.f32 %v316, %v348
      %v381 = vadd.f32 %v317, %v349
      %v382 = vadd.f32 %v318, %v350
      %v383 = vadd.f32 %v319, %v351
      %v384 = vadd.f32 %v320, %v352
      %v385 = vadd.f32 %v321, %v353
      %v386 = vadd.f32 %v322, %v354
      %v387 = vadd.f32 %v323, %v355
      %v388 = vadd.f32 %v324, %v356
      %v389 = vadd.f32 %v325, %v357
      %v390 = vadd.f32 %v326, %v358
      %391 = vst [vmem:[%s221] sm:$0xff] %v359
      %392 = vst [vmem:[%s221 + $0x8] sm:$0xff] %v360
      %393 = vst [vmem:[%s221 + $0x10] sm:$0xff] %v361
      %394 = vst [vmem:[%s221 + $0x18] sm:$0xff] %v362
      %395 = vst [vmem:[%s221 + $0x20] sm:$0xff] %v363
      %396 = vst [vmem:[%s221 + $0x28] sm:$0xff] %v364
      %397 = vst [vmem:[%s221 + $0x30] sm:$0xff] %v365
      %398 = vst [vmem:[%s221 + $0x38] sm:$0xff] %v366
      %399 = vst [vmem:[%s221 + $0x40] sm:$0xff] %v367
      %400 = vst [vmem:[%s221 + $0x48] sm:$0xff] %v368
      %401 = vst [vmem:[%s221 + $0x50] sm:$0xff] %v369
      %402 = vst [vmem:[%s221 + $0x58] sm:$0xff] %v370
      %403 = vst [vmem:[%s221 + $0x60] sm:$0xff] %v371
      %404 = vst [vmem:[%s221 + $0x68] sm:$0xff] %v372
      %405 = vst [vmem:[%s221 + $0x70] sm:$0xff] %v373
      %406 = vst [vmem:[%s221 + $0x78] sm:$0xff] %v374
      %407 = vst [vmem:[%s221 + $0x80] sm:$0xff] %v375
      %408 = vst [vmem:[%s221 + $0x88] sm:$0xff] %v376
      %409 = vst [vmem:[%s221 + $0x90] sm:$0xff] %v377
      %410 = vst [vmem:[%s221 + $0x98] sm:$0xff] %v378
      %411 = vst [vmem:[%s221 + $0xa0] sm:$0xff] %v379
      %412 = vst [vmem:[%s221 + $0xa8] sm:$0xff] %v380
      %413 = vst [vmem:[%s221 + $0xb0] sm:$0xff] %v381
      %414 = vst [vmem:[%s221 + $0xb8] sm:$0xff] %v382
      %415 = vst [vmem:[%s221 + $0xc0] sm:$0xff] %v383
      %416 = vst [vmem:[%s221 + $0xc8] sm:$0xff] %v384
      %417 = vst [vmem:[%s221 + $0xd0] sm:$0xff] %v385
      %418 = vst [vmem:[%s221 + $0xd8] sm:$0xff] %v386
      %419 = vst [vmem:[%s221 + $0xe0] sm:$0xff] %v387
      %420 = vst [vmem:[%s221 + $0xe8] sm:$0xff] %v388
      %421 = vst [vmem:[%s221 + $0xf0] sm:$0xff] %v389
      %422 = vst [vmem:[%s221 + $0xf8] sm:$0xff] %v390
      %s423 = smul.u32 32, %s15
      %p424 = scmp.lt.s32.totalorder %s423, 63
      %s425 = scalar_select %p424, %s423, 63
      %s426 = smul.addr %s425, 8
      %s427 = scalar_lea.vmem %s4, %s426
      // Predicated region
      $region37: #{residual_block.7} parent=35 // pred_check
        %p428 = pneg %p127
      $region38: #{residual_block.7} parent=35 // pred_check_branch
        %430 = sbr.rel (%p428) target = $region40
      $region39: #{residual_block.7} parent=35 // pred_region
        %s431 = smul.u32 32, %s15
      $region40: #{residual_block.7} parent=35 // pred_fallthru
        _
    $region36: #{residual_block.7} parent=5 // pred_fallthru
      _
    %p432 = scmp.le.s32.totalorder 2, %s10
    // Predicated region
    $region41: #{residual_block.7} parent=5 // pred_check
      %p433 = pneg %p432
    $region42: #{residual_block.7} parent=5 // pred_check_branch
      %435 = sbr.rel (%p433) target = $region44
    $region43: #{residual_block.7} parent=5 // pred_region
      %s436 = ssub.s32 %s10, 2
      // Predicated region
      $region45: #{residual_block.7} parent=43 // pred_check
        %p437 = pneg %p133
      $region46: #{residual_block.7} parent=43 // pred_check_branch
        %439 = sbr.rel (%p437) target = $region48
      $region47: #{residual_block.7} parent=43 // pred_region
        %s440 = smul.u32 32, %s16
        %p441 = scmp.lt.s32.totalorder %s440, 63
        %s442 = scalar_select %p441, %s440, 63
        %s443 = smul.addr %s442, 8
        %s444 = scalar_lea.vmem %s4, %s443
      $region48: #{residual_block.7} parent=43 // pred_fallthru
        _
    $region44: #{residual_block.7} parent=5 // pred_fallthru
      _
  $region6: #{residual_block.7} parent=0 // loop_footer
    %s14 = sadd.s32 1, %s10
  $region7: #{residual_block.7} parent=0 // loop_footer_branch
    %9 = sbr.rel target = $region3
  $region8: #{residual_block.7} parent=0 // loop_exit
    _

</llo_original>
